<compile_context>
chip_gen: v7x
topology: tpu7x:2x2x1
jax: 0.10.0
libtpu: 0.0.40
codegen_flags: <defaults>
</compile_context>

<pallas_src>
import jax
import jax.numpy as jnp
from jax import lax
from jax.experimental import pallas as pl
from jax.experimental.pallas import tpu as pltpu

INPUT_DIM = 6
D_MODEL = 32
NLAYERS = 2
LN_EPS = 1e-5


# ----------------------------------------------------------------------------- kernel
def _lstm_encoder_kernel(xp_ref,    # (T, BT, 4H) f32  : x @ W_ih0 + b0 (pre-projected, gate order i,f,o,g)
                         whh0_ref,  # (H, 4H)   bf16   : layer-0 recurrent weights
                         w1_ref,    # (2H, 4H)  bf16   : fused [W_ih1 ; W_hh1]
                         b1_ref,    # (1, 4H)   f32
                         gamma_ref, # (1, H)    f32
                         beta_ref,  # (1, H)    f32
                         out_ref):  # (BT, H)   f32
    T = xp_ref.shape[0]
    BT = xp_ref.shape[1]
    H = D_MODEL

    # Weights loaded once (already bf16 -> half the VMEM traffic, MXU-native).
    whh0 = whh0_ref[...]
    w1 = w1_ref[...]
    # Broadcast bias once before the loop (JAX does not CSE broadcast_in_dim).
    b1 = jnp.broadcast_to(b1_ref[...], (BT, 4 * H))

    def gates_to_h_c(gates, c_prev):
        # Gate order (i, f, o, g): one contiguous sigmoid, one tanh.  All f32.
        sg = jax.nn.sigmoid(gates[:, :3 * H])
        i = sg[:, 0 * H:1 * H]
        f = sg[:, 1 * H:2 * H]
        o = sg[:, 2 * H:3 * H]
        g = jnp.tanh(gates[:, 3 * H:4 * H])
        c = f * c_prev + i * g
        h = o * jnp.tanh(c)
        return h, c

    def step(t, carry):
        h0, c0, h1, c1 = carry
        # Layer 0: input projection already hoisted out; one recurrent matmul.
        g0 = xp_ref[t] + jnp.dot(h0.astype(jnp.bfloat16), whh0,
                                 preferred_element_type=jnp.float32)
        h0, c0 = gates_to_h_c(g0, c0)
        # Layer 1: fused ih/hh matmul on concat(h0_t, h1_{t-1}).
        hcat = jnp.concatenate([h0, h1], axis=-1).astype(jnp.bfloat16)   # (BT, 2H)
        g1 = jnp.dot(hcat, w1, preferred_element_type=jnp.float32) + b1
        h1, c1 = gates_to_h_c(g1, c1)
        return (h0, c0, h1, c1)

    zeros = jnp.zeros((BT, H), jnp.float32)
    _, _, h1, _ = lax.fori_loop(0, T, step, (zeros, zeros, zeros, zeros),
                                unroll=True)

    # LayerNorm over the feature dim of the last timestep of the top layer.
    mean = jnp.mean(h1, axis=-1, keepdims=True)
    var = jnp.mean((h1 - mean) ** 2, axis=-1, keepdims=True)
    normed = (h1 - mean) * lax.rsqrt(var + LN_EPS)
    out_ref[...] = normed * gamma_ref[...] + beta_ref[...]


# ------------------------------------------------------------------------ param prep
def _gate_perm(H):
    # PyTorch gate order (i, f, g, o) -> kernel order (i, f, o, g).
    return jnp.concatenate([jnp.arange(0, 2 * H),
                            jnp.arange(3 * H, 4 * H),
                            jnp.arange(2 * H, 3 * H)])


def prepare_kernel_params(p):
    """Permute gate columns to (i,f,o,g), fuse layer-1 weights, cast the
    recurrent matmul weights to bf16.  (Can be done once at param-load time.)"""
    H = D_MODEL
    perm = _gate_perm(H)
    ro = lambda w: w[:, perm]
    return dict(
        wih0=ro(p["wih0"]),                                   # f32: used in wrapper pre-projection
        b0=ro(p["b0"]),                                       # f32: folded into pre-projection
        whh0=ro(p["whh0"]).astype(jnp.bfloat16),              # bf16 recurrent operand
        w1=jnp.concatenate([ro(p["wih1"]), ro(p["whh1"])],
                           axis=0).astype(jnp.bfloat16),      # (2H, 4H) fused, bf16
        b1=ro(p["b1"]),
        gamma=p["gamma"], beta=p["beta"],
    )


# -------------------------------------------------------------------------- wrapper
def lstm_encoder_forward(x, params):
    """x: (B, T, INPUT_DIM) float32 -> (B, D_MODEL) float32."""
    B, T, Din = x.shape
    assert Din == INPUT_DIM
    H = D_MODEL
    kp = prepare_kernel_params(params)

    # Hoisted layer-0 input projection: one large, lane-dense, time-major matmul
    # with the summed layer-0 bias folded in.  Shape (T, B, 4H), last dim = 128.
    xproj = (jnp.einsum("btd,dg->tbg", x.astype(jnp.float32), kp["wih0"],
                        preferred_element_type=jnp.float32)
             + kp["b0"])

    # Batch tiling: whole batch for small B; tile by 8 (sublane multiple) otherwise
    # so the "parallel" grid axis can be sharded across TensorCores (v7x).
    BT = B if B <= 8 else 8
    assert B % BT == 0, "batch must be divisible by the batch tile"
    grid = (B // BT,)

    # TODO(synk): for production-scale T*B, stream xproj over T (extra grid axis or
    # manual double-buffering) instead of keeping it fully VMEM-resident.
    return pl.pallas_call(
        _lstm_encoder_kernel,
        out_shape=jax.ShapeDtypeStruct((B, H), jnp.float32),
        grid_spec=pltpu.PrefetchScalarGridSpec(
            num_scalar_prefetch=0,
            grid=grid,
            in_specs=[
                pl.BlockSpec((T, BT, 4 * H), lambda i: (0, i, 0)),  # xproj: tiled over batch
                pl.BlockSpec((H, 4 * H), lambda i: (0, 0)),         # W_hh0 (replicated)
                pl.BlockSpec((2 * H, 4 * H), lambda i: (0, 0)),     # [W_ih1; W_hh1]
                pl.BlockSpec((1, 4 * H), lambda i: (0, 0)),         # b1
                pl.BlockSpec((1, H), lambda i: (0, 0)),             # gamma
                pl.BlockSpec((1, H), lambda i: (0, 0)),             # beta
            ],
            out_specs=pl.BlockSpec((BT, H), lambda i: (i, 0)),
        ),
        compiler_params=pltpu.CompilerParams(
            dimension_semantics=("parallel",)),
    )(xproj, kp["whh0"], kp["w1"], kp["b1"], kp["gamma"], kp["beta"])


# ----------------------------------------------------------------------- init / ref
def init_params(key):
    """Deterministic init matching PyTorch LSTM shapes (U(-1/sqrt(H), 1/sqrt(H))).
    Weights stored transposed vs. PyTorch, i.e. (in, 4H), PyTorch gate order (i,f,g,o)."""
    H = D_MODEL
    k = 1.0 / jnp.sqrt(jnp.float32(H))
    keys = jax.random.split(key, 8)

    def u(kk, shape):
        return jax.random.uniform(kk, shape, jnp.float32, -k, k)

    wih0 = u(keys[0], (INPUT_DIM, 4 * H))
    whh0 = u(keys[1], (H, 4 * H))
    b0 = u(keys[2], (1, 4 * H)) + u(keys[3], (1, 4 * H))    # bias_ih + bias_hh
    wih1 = u(keys[4], (H, 4 * H))
    whh1 = u(keys[5], (H, 4 * H))
    b1 = u(keys[6], (1, 4 * H)) + u(keys[7], (1, 4 * H))
    gamma = jnp.ones((1, H), jnp.float32)                   # LayerNorm default init
    beta = jnp.zeros((1, H), jnp.float32)
    return dict(wih0=wih0, whh0=whh0, b0=b0,
                wih1=wih1, whh1=whh1, b1=b1,
                gamma=gamma, beta=beta)


def reference_forward(x, p, *, bf16_recurrent=False):
    """Pure-JAX reference of the PyTorch eval-mode forward.

    bf16_recurrent=False: exact f32 PyTorch semantics.
    bf16_recurrent=True : mirrors the kernel's numerics (hidden-state matmul
        operands rounded to bf16, f32 accumulation; raw input x kept f32).
    """
    H = D_MODEL
    B, T, _ = x.shape
    castr = (lambda a: a.astype(jnp.bfloat16)) if bf16_recurrent else (lambda a: a)

    def cell(x_in, h, c, wih, whh, b, recurrent_input):
        xi, wi = (castr(x_in), castr(wih)) if recurrent_input else (x_in, wih)
        g = (jnp.dot(xi, wi, preferred_element_type=jnp.float32)
             + jnp.dot(castr(h), castr(whh), preferred_element_type=jnp.float32)
             + b)
        i = jax.nn.sigmoid(g[:, 0 * H:1 * H])
        f = jax.nn.sigmoid(g[:, 1 * H:2 * H])
        gg = jnp.tanh(g[:, 2 * H:3 * H])
        o = jax.nn.sigmoid(g[:, 3 * H:4 * H])
        c = f * c + i * gg
        return o * jnp.tanh(c), c

    h0 = c0 = h1 = c1 = jnp.zeros((B, H), jnp.float32)
    for t in range(T):
        h0, c0 = cell(x[:, t, :], h0, c0, p["wih0"], p["whh0"], p["b0"], False)
        h1, c1 = cell(h0, h1, c1, p["wih1"], p["whh1"], p["b1"], True)
    mean = jnp.mean(h1, axis=-1, keepdims=True)
    var = jnp.mean((h1 - mean) ** 2, axis=-1, keepdims=True)
    return (h1 - mean) * lax.rsqrt(var + LN_EPS) * p["gamma"] + p["beta"]


# ----------------------------------------------------------------------------- main
if __name__ == "__main__":
    key = jax.random.PRNGKey(0)
    k_param, k_x = jax.random.split(key)

    B, T = 2, 8
    x = jax.random.normal(k_x, (B, T, INPUT_DIM), jnp.float32)
    params = init_params(k_param)

    fwd = jax.jit(lstm_encoder_forward)
    out = jax.block_until_ready(fwd(x, params))
    assert out.shape == (B, D_MODEL)

    # Tight check vs. a reference that mirrors the kernel's numerics
    # (bf16-rounded recurrent matmul operands, f32 accumulation / elementwise).
    ref_mirror = reference_forward(x, params, bf16_recurrent=True)
    assert jnp.allclose(out, ref_mirror, atol=1e-3, rtol=1e-3), \
        "mismatch vs bf16-operand reference"

    # Sanity check vs. exact f32 PyTorch-eval semantics.  Loose tolerance because
    # bf16 MXU operands + LayerNorm over small-variance features amplify rounding
    # (per perf-review guidance on bf16 operands).
    ref_f32 = reference_forward(x, params, bf16_recurrent=False)
    assert jnp.allclose(out, ref_f32, atol=1e-1, rtol=1e-1), \
        "mismatch vs f32 reference"

    print("KERNEL_OK")
</pallas_src>

<mosaic_0001>
module attributes {stable_mosaic.version = 11 : i64} {
  func.func @_lstm_encoder_kernel(%arg0: i32, %arg1: memref<8x2x128xf32, #tpu.memory_space<vmem>>, %arg2: memref<32x128xbf16, #tpu.memory_space<vmem>>, %arg3: memref<64x128xbf16, #tpu.memory_space<vmem>>, %arg4: memref<1x128xf32, #tpu.memory_space<vmem>>, %arg5: memref<1x32xf32, #tpu.memory_space<vmem>>, %arg6: memref<1x32xf32, #tpu.memory_space<vmem>>, %arg7: memref<2x32xf32, #tpu.memory_space<vmem>>) attributes {dimension_semantics = [#tpu.dimension_semantics<parallel>], iteration_bounds = array<i64: 1>, scalar_prefetch = 0 : i64, scratch_operands = 0 : i64, tpu.core_type = #tpu.core_type<tc>, window_params = [{transform_indices = @transform_0, window_bounds = array<i64: 8, 2, 128>}, {pipeline_mode = #tpu.pipeline_mode<synchronous>, transform_indices = @transform_1, window_bounds = array<i64: 32, 128>}, {pipeline_mode = #tpu.pipeline_mode<synchronous>, transform_indices = @transform_2, window_bounds = array<i64: 64, 128>}, {pipeline_mode = #tpu.pipeline_mode<synchronous>, transform_indices = @transform_3, window_bounds = array<i64: 1, 128>}, {pipeline_mode = #tpu.pipeline_mode<synchronous>, transform_indices = @transform_4, window_bounds = array<i64: 1, 32>}, {pipeline_mode = #tpu.pipeline_mode<synchronous>, transform_indices = @transform_5, window_bounds = array<i64: 1, 32>}, {transform_indices = @transform_6, window_bounds = array<i64: 2, 32>}]} {
    %c0 = arith.constant 0 : index
    %c0_0 = arith.constant 0 : index
    %0 = vector.load %arg2[%c0, %c0_0] : memref<32x128xbf16, #tpu.memory_space<vmem>>, vector<32x128xbf16>
    %c0_1 = arith.constant 0 : index
    %c0_2 = arith.constant 0 : index
    %1 = vector.load %arg3[%c0_1, %c0_2] : memref<64x128xbf16, #tpu.memory_space<vmem>>, vector<64x128xbf16>
    %c0_3 = arith.constant 0 : index
    %c0_4 = arith.constant 0 : index
    %2 = vector.load %arg4[%c0_3, %c0_4] : memref<1x128xf32, #tpu.memory_space<vmem>>, vector<1x128xf32>
    %3 = vector.shape_cast %2 : vector<1x128xf32> to vector<1x128xf32>
    %4 = vector.broadcast %3 : vector<1x128xf32> to vector<2x128xf32>
    %cst = arith.constant 0.000000e+00 : f32
    %5 = vector.broadcast %cst : f32 to vector<2x32xf32>
    %c0_i32 = arith.constant 0 : i32
    %6 = arith.index_cast %c0_i32 : i32 to index
    %c0_5 = arith.constant 0 : index
    %c0_6 = arith.constant 0 : index
    %7 = vector.load %arg1[%6, %c0_5, %c0_6] : memref<8x2x128xf32, #tpu.memory_space<vmem>>, vector<1x2x128xf32>
    %8 = vector.shape_cast %7 : vector<1x2x128xf32> to vector<2x128xf32>
    %9 = arith.truncf %5 : vector<2x32xf32> to vector<2x32xbf16>
    %cst_7 = arith.constant dense<0.000000e+00> : vector<2x128xf32>
    %10 = tpu.matmul %9, %0, %cst_7 {dimension_numbers = #tpu.dot_dimension_numbers<[1], [0], [0], [1], [0, 0, 1, 1], [], []>} : vector<2x32xbf16>, vector<32x128xbf16>, vector<2x128xf32> -> vector<2x128xf32>
    %11 = arith.addf %8, %10 : vector<2x128xf32>
    %12 = vector.extract_strided_slice %11 {offsets = [0, 0], sizes = [2, 96], strides = [1, 1]} : vector<2x128xf32> to vector<2x96xf32>
    %13 = arith.negf %12 : vector<2x96xf32>
    %14 = math.exp %13 : vector<2x96xf32>
    %cst_8 = arith.constant 1.000000e+00 : f32
    %15 = vector.broadcast %cst_8 : f32 to vector<2x96xf32>
    %16 = arith.addf %15, %14 : vector<2x96xf32>
    %17 = arith.divf %15, %16 : vector<2x96xf32>
    %18 = vector.extract_strided_slice %17 {offsets = [0, 0], sizes = [2, 32], strides = [1, 1]} : vector<2x96xf32> to vector<2x32xf32>
    %19 = vector.extract_strided_slice %17 {offsets = [0, 32], sizes = [2, 32], strides = [1, 1]} : vector<2x96xf32> to vector<2x32xf32>
    %20 = vector.extract_strided_slice %17 {offsets = [0, 64], sizes = [2, 32], strides = [1, 1]} : vector<2x96xf32> to vector<2x32xf32>
    %21 = vector.extract_strided_slice %11 {offsets = [0, 96], sizes = [2, 32], strides = [1, 1]} : vector<2x128xf32> to vector<2x32xf32>
    %22 = math.tanh %21 : vector<2x32xf32>
    %23 = arith.mulf %19, %5 : vector<2x32xf32>
    %24 = arith.mulf %18, %22 : vector<2x32xf32>
    %25 = arith.addf %23, %24 : vector<2x32xf32>
    %26 = math.tanh %25 : vector<2x32xf32>
    %27 = arith.mulf %20, %26 : vector<2x32xf32>
    %28 = tpu.concatenate %27, %5 in 1 : vector<2x32xf32>, vector<2x32xf32> -> vector<2x64xf32>
    %29 = arith.truncf %28 : vector<2x64xf32> to vector<2x64xbf16>
    %cst_9 = arith.constant dense<0.000000e+00> : vector<2x128xf32>
    %30 = tpu.matmul %29, %1, %cst_9 {dimension_numbers = #tpu.dot_dimension_numbers<[1], [0], [0], [1], [0, 0, 1, 1], [], []>} : vector<2x64xbf16>, vector<64x128xbf16>, vector<2x128xf32> -> vector<2x128xf32>
    %31 = arith.addf %30, %4 : vector<2x128xf32>
    %32 = vector.extract_strided_slice %31 {offsets = [0, 0], sizes = [2, 96], strides = [1, 1]} : vector<2x128xf32> to vector<2x96xf32>
    %33 = arith.negf %32 : vector<2x96xf32>
    %34 = math.exp %33 : vector<2x96xf32>
    %cst_10 = arith.constant 1.000000e+00 : f32
    %35 = vector.broadcast %cst_10 : f32 to vector<2x96xf32>
    %36 = arith.addf %35, %34 : vector<2x96xf32>
    %37 = arith.divf %35, %36 : vector<2x96xf32>
    %38 = vector.extract_strided_slice %37 {offsets = [0, 0], sizes = [2, 32], strides = [1, 1]} : vector<2x96xf32> to vector<2x32xf32>
    %39 = vector.extract_strided_slice %37 {offsets = [0, 32], sizes = [2, 32], strides = [1, 1]} : vector<2x96xf32> to vector<2x32xf32>
    %40 = vector.extract_strided_slice %37 {offsets = [0, 64], sizes = [2, 32], strides = [1, 1]} : vector<2x96xf32> to vector<2x32xf32>
    %41 = vector.extract_strided_slice %31 {offsets = [0, 96], sizes = [2, 32], strides = [1, 1]} : vector<2x128xf32> to vector<2x32xf32>
    %42 = math.tanh %41 : vector<2x32xf32>
    %43 = arith.mulf %39, %5 : vector<2x32xf32>
    %44 = arith.mulf %38, %42 : vector<2x32xf32>
    %45 = arith.addf %43, %44 : vector<2x32xf32>
    %46 = math.tanh %45 : vector<2x32xf32>
    %47 = arith.mulf %40, %46 : vector<2x32xf32>
    %c1_i32 = arith.constant 1 : i32
    %48 = arith.index_cast %c1_i32 : i32 to index
    %c0_11 = arith.constant 0 : index
    %c0_12 = arith.constant 0 : index
    %49 = vector.load %arg1[%48, %c0_11, %c0_12] : memref<8x2x128xf32, #tpu.memory_space<vmem>>, vector<1x2x128xf32>
    %50 = vector.shape_cast %49 : vector<1x2x128xf32> to vector<2x128xf32>
    %51 = arith.truncf %27 : vector<2x32xf32> to vector<2x32xbf16>
    %cst_13 = arith.constant dense<0.000000e+00> : vector<2x128xf32>
    %52 = tpu.matmul %51, %0, %cst_13 {dimension_numbers = #tpu.dot_dimension_numbers<[1], [0], [0], [1], [0, 0, 1, 1], [], []>} : vector<2x32xbf16>, vector<32x128xbf16>, vector<2x128xf32> -> vector<2x128xf32>
    %53 = arith.addf %50, %52 : vector<2x128xf32>
    %54 = vector.extract_strided_slice %53 {offsets = [0, 0], sizes = [2, 96], strides = [1, 1]} : vector<2x128xf32> to vector<2x96xf32>
    %55 = arith.negf %54 : vector<2x96xf32>
    %56 = math.exp %55 : vector<2x96xf32>
    %cst_14 = arith.constant 1.000000e+00 : f32
    %57 = vector.broadcast %cst_14 : f32 to vector<2x96xf32>
    %58 = arith.addf %57, %56 : vector<2x96xf32>
    %59 = arith.divf %57, %58 : vector<2x96xf32>
    %60 = vector.extract_strided_slice %59 {offsets = [0, 0], sizes = [2, 32], strides = [1, 1]} : vector<2x96xf32> to vector<2x32xf32>
    %61 = vector.extract_strided_slice %59 {offsets = [0, 32], sizes = [2, 32], strides = [1, 1]} : vector<2x96xf32> to vector<2x32xf32>
    %62 = vector.extract_strided_slice %59 {offsets = [0, 64], sizes = [2, 32], strides = [1, 1]} : vector<2x96xf32> to vector<2x32xf32>
    %63 = vector.extract_strided_slice %53 {offsets = [0, 96], sizes = [2, 32], strides = [1, 1]} : vector<2x128xf32> to vector<2x32xf32>
    %64 = math.tanh %63 : vector<2x32xf32>
    %65 = arith.mulf %61, %25 : vector<2x32xf32>
    %66 = arith.mulf %60, %64 : vector<2x32xf32>
    %67 = arith.addf %65, %66 : vector<2x32xf32>
    %68 = math.tanh %67 : vector<2x32xf32>
    %69 = arith.mulf %62, %68 : vector<2x32xf32>
    %70 = tpu.concatenate %69, %47 in 1 : vector<2x32xf32>, vector<2x32xf32> -> vector<2x64xf32>
    %71 = arith.truncf %70 : vector<2x64xf32> to vector<2x64xbf16>
    %cst_15 = arith.constant dense<0.000000e+00> : vector<2x128xf32>
    %72 = tpu.matmul %71, %1, %cst_15 {dimension_numbers = #tpu.dot_dimension_numbers<[1], [0], [0], [1], [0, 0, 1, 1], [], []>} : vector<2x64xbf16>, vector<64x128xbf16>, vector<2x128xf32> -> vector<2x128xf32>
    %73 = arith.addf %72, %4 : vector<2x128xf32>
    %74 = vector.extract_strided_slice %73 {offsets = [0, 0], sizes = [2, 96], strides = [1, 1]} : vector<2x128xf32> to vector<2x96xf32>
    %75 = arith.negf %74 : vector<2x96xf32>
    %76 = math.exp %75 : vector<2x96xf32>
    %cst_16 = arith.constant 1.000000e+00 : f32
    %77 = vector.broadcast %cst_16 : f32 to vector<2x96xf32>
    %78 = arith.addf %77, %76 : vector<2x96xf32>
    %79 = arith.divf %77, %78 : vector<2x96xf32>
    %80 = vector.extract_strided_slice %79 {offsets = [0, 0], sizes = [2, 32], strides = [1, 1]} : vector<2x96xf32> to vector<2x32xf32>
    %81 = vector.extract_strided_slice %79 {offsets = [0, 32], sizes = [2, 32], strides = [1, 1]} : vector<2x96xf32> to vector<2x32xf32>
    %82 = vector.extract_strided_slice %79 {offsets = [0, 64], sizes = [2, 32], strides = [1, 1]} : vector<2x96xf32> to vector<2x32xf32>
    %83 = vector.extract_strided_slice %73 {offsets = [0, 96], sizes = [2, 32], strides = [1, 1]} : vector<2x128xf32> to vector<2x32xf32>
    %84 = math.tanh %83 : vector<2x32xf32>
    %85 = arith.mulf %81, %45 : vector<2x32xf32>
    %86 = arith.mulf %80, %84 : vector<2x32xf32>
    %87 = arith.addf %85, %86 : vector<2x32xf32>
    %88 = math.tanh %87 : vector<2x32xf32>
    %89 = arith.mulf %82, %88 : vector<2x32xf32>
    %c2_i32 = arith.constant 2 : i32
    %90 = arith.index_cast %c2_i32 : i32 to index
    %c0_17 = arith.constant 0 : index
    %c0_18 = arith.constant 0 : index
    %91 = vector.load %arg1[%90, %c0_17, %c0_18] : memref<8x2x128xf32, #tpu.memory_space<vmem>>, vector<1x2x128xf32>
    %92 = vector.shape_cast %91 : vector<1x2x128xf32> to vector<2x128xf32>
    %93 = arith.truncf %69 : vector<2x32xf32> to vector<2x32xbf16>
    %cst_19 = arith.constant dense<0.000000e+00> : vector<2x128xf32>
    %94 = tpu.matmul %93, %0, %cst_19 {dimension_numbers = #tpu.dot_dimension_numbers<[1], [0], [0], [1], [0, 0, 1, 1], [], []>} : vector<2x32xbf16>, vector<32x128xbf16>, vector<2x128xf32> -> vector<2x128xf32>
    %95 = arith.addf %92, %94 : vector<2x128xf32>
    %96 = vector.extract_strided_slice %95 {offsets = [0, 0], sizes = [2, 96], strides = [1, 1]} : vector<2x128xf32> to vector<2x96xf32>
    %97 = arith.negf %96 : vector<2x96xf32>
    %98 = math.exp %97 : vector<2x96xf32>
    %cst_20 = arith.constant 1.000000e+00 : f32
    %99 = vector.broadcast %cst_20 : f32 to vector<2x96xf32>
    %100 = arith.addf %99, %98 : vector<2x96xf32>
    %101 = arith.divf %99, %100 : vector<2x96xf32>
    %102 = vector.extract_strided_slice %101 {offsets = [0, 0], sizes = [2, 32], strides = [1, 1]} : vector<2x96xf32> to vector<2x32xf32>
    %103 = vector.extract_strided_slice %101 {offsets = [0, 32], sizes = [2, 32], strides = [1, 1]} : vector<2x96xf32> to vector<2x32xf32>
    %104 = vector.extract_strided_slice %101 {offsets = [0, 64], sizes = [2, 32], strides = [1, 1]} : vector<2x96xf32> to vector<2x32xf32>
    %105 = vector.extract_strided_slice %95 {offsets = [0, 96], sizes = [2, 32], strides = [1, 1]} : vector<2x128xf32> to vector<2x32xf32>
    %106 = math.tanh %105 : vector<2x32xf32>
    %107 = arith.mulf %103, %67 : vector<2x32xf32>
    %108 = arith.mulf %102, %106 : vector<2x32xf32>
    %109 = arith.addf %107, %108 : vector<2x32xf32>
    %110 = math.tanh %109 : vector<2x32xf32>
    %111 = arith.mulf %104, %110 : vector<2x32xf32>
    %112 = tpu.concatenate %111, %89 in 1 : vector<2x32xf32>, vector<2x32xf32> -> vector<2x64xf32>
    %113 = arith.truncf %112 : vector<2x64xf32> to vector<2x64xbf16>
    %cst_21 = arith.constant dense<0.000000e+00> : vector<2x128xf32>
    %114 = tpu.matmul %113, %1, %cst_21 {dimension_numbers = #tpu.dot_dimension_numbers<[1], [0], [0], [1], [0, 0, 1, 1], [], []>} : vector<2x64xbf16>, vector<64x128xbf16>, vector<2x128xf32> -> vector<2x128xf32>
    %115 = arith.addf %114, %4 : vector<2x128xf32>
    %116 = vector.extract_strided_slice %115 {offsets = [0, 0], sizes = [2, 96], strides = [1, 1]} : vector<2x128xf32> to vector<2x96xf32>
    %117 = arith.negf %116 : vector<2x96xf32>
    %118 = math.exp %117 : vector<2x96xf32>
    %cst_22 = arith.constant 1.000000e+00 : f32
    %119 = vector.broadcast %cst_22 : f32 to vector<2x96xf32>
    %120 = arith.addf %119, %118 : vector<2x96xf32>
    %121 = arith.divf %119, %120 : vector<2x96xf32>
    %122 = vector.extract_strided_slice %121 {offsets = [0, 0], sizes = [2, 32], strides = [1, 1]} : vector<2x96xf32> to vector<2x32xf32>
    %123 = vector.extract_strided_slice %121 {offsets = [0, 32], sizes = [2, 32], strides = [1, 1]} : vector<2x96xf32> to vector<2x32xf32>
    %124 = vector.extract_strided_slice %121 {offsets = [0, 64], sizes = [2, 32], strides = [1, 1]} : vector<2x96xf32> to vector<2x32xf32>
    %125 = vector.extract_strided_slice %115 {offsets = [0, 96], sizes = [2, 32], strides = [1, 1]} : vector<2x128xf32> to vector<2x32xf32>
    %126 = math.tanh %125 : vector<2x32xf32>
    %127 = arith.mulf %123, %87 : vector<2x32xf32>
    %128 = arith.mulf %122, %126 : vector<2x32xf32>
    %129 = arith.addf %127, %128 : vector<2x32xf32>
    %130 = math.tanh %129 : vector<2x32xf32>
    %131 = arith.mulf %124, %130 : vector<2x32xf32>
    %c3_i32 = arith.constant 3 : i32
    %132 = arith.index_cast %c3_i32 : i32 to index
    %c0_23 = arith.constant 0 : index
    %c0_24 = arith.constant 0 : index
    %133 = vector.load %arg1[%132, %c0_23, %c0_24] : memref<8x2x128xf32, #tpu.memory_space<vmem>>, vector<1x2x128xf32>
    %134 = vector.shape_cast %133 : vector<1x2x128xf32> to vector<2x128xf32>
    %135 = arith.truncf %111 : vector<2x32xf32> to vector<2x32xbf16>
    %cst_25 = arith.constant dense<0.000000e+00> : vector<2x128xf32>
    %136 = tpu.matmul %135, %0, %cst_25 {dimension_numbers = #tpu.dot_dimension_numbers<[1], [0], [0], [1], [0, 0, 1, 1], [], []>} : vector<2x32xbf16>, vector<32x128xbf16>, vector<2x128xf32> -> vector<2x128xf32>
    %137 = arith.addf %134, %136 : vector<2x128xf32>
    %138 = vector.extract_strided_slice %137 {offsets = [0, 0], sizes = [2, 96], strides = [1, 1]} : vector<2x128xf32> to vector<2x96xf32>
    %139 = arith.negf %138 : vector<2x96xf32>
    %140 = math.exp %139 : vector<2x96xf32>
    %cst_26 = arith.constant 1.000000e+00 : f32
    %141 = vector.broadcast %cst_26 : f32 to vector<2x96xf32>
    %142 = arith.addf %141, %140 : vector<2x96xf32>
    %143 = arith.divf %141, %142 : vector<2x96xf32>
    %144 = vector.extract_strided_slice %143 {offsets = [0, 0], sizes = [2, 32], strides = [1, 1]} : vector<2x96xf32> to vector<2x32xf32>
    %145 = vector.extract_strided_slice %143 {offsets = [0, 32], sizes = [2, 32], strides = [1, 1]} : vector<2x96xf32> to vector<2x32xf32>
    %146 = vector.extract_strided_slice %143 {offsets = [0, 64], sizes = [2, 32], strides = [1, 1]} : vector<2x96xf32> to vector<2x32xf32>
    %147 = vector.extract_strided_slice %137 {offsets = [0, 96], sizes = [2, 32], strides = [1, 1]} : vector<2x128xf32> to vector<2x32xf32>
    %148 = math.tanh %147 : vector<2x32xf32>
    %149 = arith.mulf %145, %109 : vector<2x32xf32>
    %150 = arith.mulf %144, %148 : vector<2x32xf32>
    %151 = arith.addf %149, %150 : vector<2x32xf32>
    %152 = math.tanh %151 : vector<2x32xf32>
    %153 = arith.mulf %146, %152 : vector<2x32xf32>
    %154 = tpu.concatenate %153, %131 in 1 : vector<2x32xf32>, vector<2x32xf32> -> vector<2x64xf32>
    %155 = arith.truncf %154 : vector<2x64xf32> to vector<2x64xbf16>
    %cst_27 = arith.constant dense<0.000000e+00> : vector<2x128xf32>
    %156 = tpu.matmul %155, %1, %cst_27 {dimension_numbers = #tpu.dot_dimension_numbers<[1], [0], [0], [1], [0, 0, 1, 1], [], []>} : vector<2x64xbf16>, vector<64x128xbf16>, vector<2x128xf32> -> vector<2x128xf32>
    %157 = arith.addf %156, %4 : vector<2x128xf32>
    %158 = vector.extract_strided_slice %157 {offsets = [0, 0], sizes = [2, 96], strides = [1, 1]} : vector<2x128xf32> to vector<2x96xf32>
    %159 = arith.negf %158 : vector<2x96xf32>
    %160 = math.exp %159 : vector<2x96xf32>
    %cst_28 = arith.constant 1.000000e+00 : f32
    %161 = vector.broadcast %cst_28 : f32 to vector<2x96xf32>
    %162 = arith.addf %161, %160 : vector<2x96xf32>
    %163 = arith.divf %161, %162 : vector<2x96xf32>
    %164 = vector.extract_strided_slice %163 {offsets = [0, 0], sizes = [2, 32], strides = [1, 1]} : vector<2x96xf32> to vector<2x32xf32>
    %165 = vector.extract_strided_slice %163 {offsets = [0, 32], sizes = [2, 32], strides = [1, 1]} : vector<2x96xf32> to vector<2x32xf32>
    %166 = vector.extract_strided_slice %163 {offsets = [0, 64], sizes = [2, 32], strides = [1, 1]} : vector<2x96xf32> to vector<2x32xf32>
    %167 = vector.extract_strided_slice %157 {offsets = [0, 96], sizes = [2, 32], strides = [1, 1]} : vector<2x128xf32> to vector<2x32xf32>
    %168 = math.tanh %167 : vector<2x32xf32>
    %169 = arith.mulf %165, %129 : vector<2x32xf32>
    %170 = arith.mulf %164, %168 : vector<2x32xf32>
    %171 = arith.addf %169, %170 : vector<2x32xf32>
    %172 = math.tanh %171 : vector<2x32xf32>
    %173 = arith.mulf %166, %172 : vector<2x32xf32>
    %c4_i32 = arith.constant 4 : i32
    %174 = arith.index_cast %c4_i32 : i32 to index
    %c0_29 = arith.constant 0 : index
    %c0_30 = arith.constant 0 : index
    %175 = vector.load %arg1[%174, %c0_29, %c0_30] : memref<8x2x128xf32, #tpu.memory_space<vmem>>, vector<1x2x128xf32>
    %176 = vector.shape_cast %175 : vector<1x2x128xf32> to vector<2x128xf32>
    %177 = arith.truncf %153 : vector<2x32xf32> to vector<2x32xbf16>
    %cst_31 = arith.constant dense<0.000000e+00> : vector<2x128xf32>
    %178 = tpu.matmul %177, %0, %cst_31 {dimension_numbers = #tpu.dot_dimension_numbers<[1], [0], [0], [1], [0, 0, 1, 1], [], []>} : vector<2x32xbf16>, vector<32x128xbf16>, vector<2x128xf32> -> vector<2x128xf32>
    %179 = arith.addf %176, %178 : vector<2x128xf32>
    %180 = vector.extract_strided_slice %179 {offsets = [0, 0], sizes = [2, 96], strides = [1, 1]} : vector<2x128xf32> to vector<2x96xf32>
    %181 = arith.negf %180 : vector<2x96xf32>
    %182 = math.exp %181 : vector<2x96xf32>
    %cst_32 = arith.constant 1.000000e+00 : f32
    %183 = vector.broadcast %cst_32 : f32 to vector<2x96xf32>
    %184 = arith.addf %183, %182 : vector<2x96xf32>
    %185 = arith.divf %183, %184 : vector<2x96xf32>
    %186 = vector.extract_strided_slice %185 {offsets = [0, 0], sizes = [2, 32], strides = [1, 1]} : vector<2x96xf32> to vector<2x32xf32>
    %187 = vector.extract_strided_slice %185 {offsets = [0, 32], sizes = [2, 32], strides = [1, 1]} : vector<2x96xf32> to vector<2x32xf32>
    %188 = vector.extract_strided_slice %185 {offsets = [0, 64], sizes = [2, 32], strides = [1, 1]} : vector<2x96xf32> to vector<2x32xf32>
    %189 = vector.extract_strided_slice %179 {offsets = [0, 96], sizes = [2, 32], strides = [1, 1]} : vector<2x128xf32> to vector<2x32xf32>
    %190 = math.tanh %189 : vector<2x32xf32>
    %191 = arith.mulf %187, %151 : vector<2x32xf32>
    %192 = arith.mulf %186, %190 : vector<2x32xf32>
    %193 = arith.addf %191, %192 : vector<2x32xf32>
    %194 = math.tanh %193 : vector<2x32xf32>
    %195 = arith.mulf %188, %194 : vector<2x32xf32>
    %196 = tpu.concatenate %195, %173 in 1 : vector<2x32xf32>, vector<2x32xf32> -> vector<2x64xf32>
    %197 = arith.truncf %196 : vector<2x64xf32> to vector<2x64xbf16>
    %cst_33 = arith.constant dense<0.000000e+00> : vector<2x128xf32>
    %198 = tpu.matmul %197, %1, %cst_33 {dimension_numbers = #tpu.dot_dimension_numbers<[1], [0], [0], [1], [0, 0, 1, 1], [], []>} : vector<2x64xbf16>, vector<64x128xbf16>, vector<2x128xf32> -> vector<2x128xf32>
    %199 = arith.addf %198, %4 : vector<2x128xf32>
    %200 = vector.extract_strided_slice %199 {offsets = [0, 0], sizes = [2, 96], strides = [1, 1]} : vector<2x128xf32> to vector<2x96xf32>
    %201 = arith.negf %200 : vector<2x96xf32>
    %202 = math.exp %201 : vector<2x96xf32>
    %cst_34 = arith.constant 1.000000e+00 : f32
    %203 = vector.broadcast %cst_34 : f32 to vector<2x96xf32>
    %204 = arith.addf %203, %202 : vector<2x96xf32>
    %205 = arith.divf %203, %204 : vector<2x96xf32>
    %206 = vector.extract_strided_slice %205 {offsets = [0, 0], sizes = [2, 32], strides = [1, 1]} : vector<2x96xf32> to vector<2x32xf32>
    %207 = vector.extract_strided_slice %205 {offsets = [0, 32], sizes = [2, 32], strides = [1, 1]} : vector<2x96xf32> to vector<2x32xf32>
    %208 = vector.extract_strided_slice %205 {offsets = [0, 64], sizes = [2, 32], strides = [1, 1]} : vector<2x96xf32> to vector<2x32xf32>
    %209 = vector.extract_strided_slice %199 {offsets = [0, 96], sizes = [2, 32], strides = [1, 1]} : vector<2x128xf32> to vector<2x32xf32>
    %210 = math.tanh %209 : vector<2x32xf32>
    %211 = arith.mulf %207, %171 : vector<2x32xf32>
    %212 = arith.mulf %206, %210 : vector<2x32xf32>
    %213 = arith.addf %211, %212 : vector<2x32xf32>
    %214 = math.tanh %213 : vector<2x32xf32>
    %215 = arith.mulf %208, %214 : vector<2x32xf32>
    %c5_i32 = arith.constant 5 : i32
    %216 = arith.index_cast %c5_i32 : i32 to index
    %c0_35 = arith.constant 0 : index
    %c0_36 = arith.constant 0 : index
    %217 = vector.load %arg1[%216, %c0_35, %c0_36] : memref<8x2x128xf32, #tpu.memory_space<vmem>>, vector<1x2x128xf32>
    %218 = vector.shape_cast %217 : vector<1x2x128xf32> to vector<2x128xf32>
    %219 = arith.truncf %195 : vector<2x32xf32> to vector<2x32xbf16>
    %cst_37 = arith.constant dense<0.000000e+00> : vector<2x128xf32>
    %220 = tpu.matmul %219, %0, %cst_37 {dimension_numbers = #tpu.dot_dimension_numbers<[1], [0], [0], [1], [0, 0, 1, 1], [], []>} : vector<2x32xbf16>, vector<32x128xbf16>, vector<2x128xf32> -> vector<2x128xf32>
    %221 = arith.addf %218, %220 : vector<2x128xf32>
    %222 = vector.extract_strided_slice %221 {offsets = [0, 0], sizes = [2, 96], strides = [1, 1]} : vector<2x128xf32> to vector<2x96xf32>
    %223 = arith.negf %222 : vector<2x96xf32>
    %224 = math.exp %223 : vector<2x96xf32>
    %cst_38 = arith.constant 1.000000e+00 : f32
    %225 = vector.broadcast %cst_38 : f32 to vector<2x96xf32>
    %226 = arith.addf %225, %224 : vector<2x96xf32>
    %227 = arith.divf %225, %226 : vector<2x96xf32>
    %228 = vector.extract_strided_slice %227 {offsets = [0, 0], sizes = [2, 32], strides = [1, 1]} : vector<2x96xf32> to vector<2x32xf32>
    %229 = vector.extract_strided_slice %227 {offsets = [0, 32], sizes = [2, 32], strides = [1, 1]} : vector<2x96xf32> to vector<2x32xf32>
    %230 = vector.extract_strided_slice %227 {offsets = [0, 64], sizes = [2, 32], strides = [1, 1]} : vector<2x96xf32> to vector<2x32xf32>
    %231 = vector.extract_strided_slice %221 {offsets = [0, 96], sizes = [2, 32], strides = [1, 1]} : vector<2x128xf32> to vector<2x32xf32>
    %232 = math.tanh %231 : vector<2x32xf32>
    %233 = arith.mulf %229, %193 : vector<2x32xf32>
    %234 = arith.mulf %228, %232 : vector<2x32xf32>
    %235 = arith.addf %233, %234 : vector<2x32xf32>
    %236 = math.tanh %235 : vector<2x32xf32>
    %237 = arith.mulf %230, %236 : vector<2x32xf32>
    %238 = tpu.concatenate %237, %215 in 1 : vector<2x32xf32>, vector<2x32xf32> -> vector<2x64xf32>
    %239 = arith.truncf %238 : vector<2x64xf32> to vector<2x64xbf16>
    %cst_39 = arith.constant dense<0.000000e+00> : vector<2x128xf32>
    %240 = tpu.matmul %239, %1, %cst_39 {dimension_numbers = #tpu.dot_dimension_numbers<[1], [0], [0], [1], [0, 0, 1, 1], [], []>} : vector<2x64xbf16>, vector<64x128xbf16>, vector<2x128xf32> -> vector<2x128xf32>
    %241 = arith.addf %240, %4 : vector<2x128xf32>
    %242 = vector.extract_strided_slice %241 {offsets = [0, 0], sizes = [2, 96], strides = [1, 1]} : vector<2x128xf32> to vector<2x96xf32>
    %243 = arith.negf %242 : vector<2x96xf32>
    %244 = math.exp %243 : vector<2x96xf32>
    %cst_40 = arith.constant 1.000000e+00 : f32
    %245 = vector.broadcast %cst_40 : f32 to vector<2x96xf32>
    %246 = arith.addf %245, %244 : vector<2x96xf32>
    %247 = arith.divf %245, %246 : vector<2x96xf32>
    %248 = vector.extract_strided_slice %247 {offsets = [0, 0], sizes = [2, 32], strides = [1, 1]} : vector<2x96xf32> to vector<2x32xf32>
    %249 = vector.extract_strided_slice %247 {offsets = [0, 32], sizes = [2, 32], strides = [1, 1]} : vector<2x96xf32> to vector<2x32xf32>
    %250 = vector.extract_strided_slice %247 {offsets = [0, 64], sizes = [2, 32], strides = [1, 1]} : vector<2x96xf32> to vector<2x32xf32>
    %251 = vector.extract_strided_slice %241 {offsets = [0, 96], sizes = [2, 32], strides = [1, 1]} : vector<2x128xf32> to vector<2x32xf32>
    %252 = math.tanh %251 : vector<2x32xf32>
    %253 = arith.mulf %249, %213 : vector<2x32xf32>
    %254 = arith.mulf %248, %252 : vector<2x32xf32>
    %255 = arith.addf %253, %254 : vector<2x32xf32>
    %256 = math.tanh %255 : vector<2x32xf32>
    %257 = arith.mulf %250, %256 : vector<2x32xf32>
    %c6_i32 = arith.constant 6 : i32
    %258 = arith.index_cast %c6_i32 : i32 to index
    %c0_41 = arith.constant 0 : index
    %c0_42 = arith.constant 0 : index
    %259 = vector.load %arg1[%258, %c0_41, %c0_42] : memref<8x2x128xf32, #tpu.memory_space<vmem>>, vector<1x2x128xf32>
    %260 = vector.shape_cast %259 : vector<1x2x128xf32> to vector<2x128xf32>
    %261 = arith.truncf %237 : vector<2x32xf32> to vector<2x32xbf16>
    %cst_43 = arith.constant dense<0.000000e+00> : vector<2x128xf32>
    %262 = tpu.matmul %261, %0, %cst_43 {dimension_numbers = #tpu.dot_dimension_numbers<[1], [0], [0], [1], [0, 0, 1, 1], [], []>} : vector<2x32xbf16>, vector<32x128xbf16>, vector<2x128xf32> -> vector<2x128xf32>
    %263 = arith.addf %260, %262 : vector<2x128xf32>
    %264 = vector.extract_strided_slice %263 {offsets = [0, 0], sizes = [2, 96], strides = [1, 1]} : vector<2x128xf32> to vector<2x96xf32>
    %265 = arith.negf %264 : vector<2x96xf32>
    %266 = math.exp %265 : vector<2x96xf32>
    %cst_44 = arith.constant 1.000000e+00 : f32
    %267 = vector.broadcast %cst_44 : f32 to vector<2x96xf32>
    %268 = arith.addf %267, %266 : vector<2x96xf32>
    %269 = arith.divf %267, %268 : vector<2x96xf32>
    %270 = vector.extract_strided_slice %269 {offsets = [0, 0], sizes = [2, 32], strides = [1, 1]} : vector<2x96xf32> to vector<2x32xf32>
    %271 = vector.extract_strided_slice %269 {offsets = [0, 32], sizes = [2, 32], strides = [1, 1]} : vector<2x96xf32> to vector<2x32xf32>
    %272 = vector.extract_strided_slice %269 {offsets = [0, 64], sizes = [2, 32], strides = [1, 1]} : vector<2x96xf32> to vector<2x32xf32>
    %273 = vector.extract_strided_slice %263 {offsets = [0, 96], sizes = [2, 32], strides = [1, 1]} : vector<2x128xf32> to vector<2x32xf32>
    %274 = math.tanh %273 : vector<2x32xf32>
    %275 = arith.mulf %271, %235 : vector<2x32xf32>
    %276 = arith.mulf %270, %274 : vector<2x32xf32>
    %277 = arith.addf %275, %276 : vector<2x32xf32>
    %278 = math.tanh %277 : vector<2x32xf32>
    %279 = arith.mulf %272, %278 : vector<2x32xf32>
    %280 = tpu.concatenate %279, %257 in 1 : vector<2x32xf32>, vector<2x32xf32> -> vector<2x64xf32>
    %281 = arith.truncf %280 : vector<2x64xf32> to vector<2x64xbf16>
    %cst_45 = arith.constant dense<0.000000e+00> : vector<2x128xf32>
    %282 = tpu.matmul %281, %1, %cst_45 {dimension_numbers = #tpu.dot_dimension_numbers<[1], [0], [0], [1], [0, 0, 1, 1], [], []>} : vector<2x64xbf16>, vector<64x128xbf16>, vector<2x128xf32> -> vector<2x128xf32>
    %283 = arith.addf %282, %4 : vector<2x128xf32>
    %284 = vector.extract_strided_slice %283 {offsets = [0, 0], sizes = [2, 96], strides = [1, 1]} : vector<2x128xf32> to vector<2x96xf32>
    %285 = arith.negf %284 : vector<2x96xf32>
    %286 = math.exp %285 : vector<2x96xf32>
    %cst_46 = arith.constant 1.000000e+00 : f32
    %287 = vector.broadcast %cst_46 : f32 to vector<2x96xf32>
    %288 = arith.addf %287, %286 : vector<2x96xf32>
    %289 = arith.divf %287, %288 : vector<2x96xf32>
    %290 = vector.extract_strided_slice %289 {offsets = [0, 0], sizes = [2, 32], strides = [1, 1]} : vector<2x96xf32> to vector<2x32xf32>
    %291 = vector.extract_strided_slice %289 {offsets = [0, 32], sizes = [2, 32], strides = [1, 1]} : vector<2x96xf32> to vector<2x32xf32>
    %292 = vector.extract_strided_slice %289 {offsets = [0, 64], sizes = [2, 32], strides = [1, 1]} : vector<2x96xf32> to vector<2x32xf32>
    %293 = vector.extract_strided_slice %283 {offsets = [0, 96], sizes = [2, 32], strides = [1, 1]} : vector<2x128xf32> to vector<2x32xf32>
    %294 = math.tanh %293 : vector<2x32xf32>
    %295 = arith.mulf %291, %255 : vector<2x32xf32>
    %296 = arith.mulf %290, %294 : vector<2x32xf32>
    %297 = arith.addf %295, %296 : vector<2x32xf32>
    %298 = math.tanh %297 : vector<2x32xf32>
    %299 = arith.mulf %292, %298 : vector<2x32xf32>
    %c7_i32 = arith.constant 7 : i32
    %300 = arith.index_cast %c7_i32 : i32 to index
    %c0_47 = arith.constant 0 : index
    %c0_48 = arith.constant 0 : index
    %301 = vector.load %arg1[%300, %c0_47, %c0_48] : memref<8x2x128xf32, #tpu.memory_space<vmem>>, vector<1x2x128xf32>
    %302 = vector.shape_cast %301 : vector<1x2x128xf32> to vector<2x128xf32>
    %303 = arith.truncf %279 : vector<2x32xf32> to vector<2x32xbf16>
    %cst_49 = arith.constant dense<0.000000e+00> : vector<2x128xf32>
    %304 = tpu.matmul %303, %0, %cst_49 {dimension_numbers = #tpu.dot_dimension_numbers<[1], [0], [0], [1], [0, 0, 1, 1], [], []>} : vector<2x32xbf16>, vector<32x128xbf16>, vector<2x128xf32> -> vector<2x128xf32>
    %305 = arith.addf %302, %304 : vector<2x128xf32>
    %306 = vector.extract_strided_slice %305 {offsets = [0, 0], sizes = [2, 96], strides = [1, 1]} : vector<2x128xf32> to vector<2x96xf32>
    %307 = arith.negf %306 : vector<2x96xf32>
    %308 = math.exp %307 : vector<2x96xf32>
    %cst_50 = arith.constant 1.000000e+00 : f32
    %309 = vector.broadcast %cst_50 : f32 to vector<2x96xf32>
    %310 = arith.addf %309, %308 : vector<2x96xf32>
    %311 = arith.divf %309, %310 : vector<2x96xf32>
    %312 = vector.extract_strided_slice %311 {offsets = [0, 0], sizes = [2, 32], strides = [1, 1]} : vector<2x96xf32> to vector<2x32xf32>
    %313 = vector.extract_strided_slice %311 {offsets = [0, 32], sizes = [2, 32], strides = [1, 1]} : vector<2x96xf32> to vector<2x32xf32>
    %314 = vector.extract_strided_slice %311 {offsets = [0, 64], sizes = [2, 32], strides = [1, 1]} : vector<2x96xf32> to vector<2x32xf32>
    %315 = vector.extract_strided_slice %305 {offsets = [0, 96], sizes = [2, 32], strides = [1, 1]} : vector<2x128xf32> to vector<2x32xf32>
    %316 = math.tanh %315 : vector<2x32xf32>
    %317 = arith.mulf %313, %277 : vector<2x32xf32>
    %318 = arith.mulf %312, %316 : vector<2x32xf32>
    %319 = arith.addf %317, %318 : vector<2x32xf32>
    %320 = math.tanh %319 : vector<2x32xf32>
    %321 = arith.mulf %314, %320 : vector<2x32xf32>
    %322 = tpu.concatenate %321, %299 in 1 : vector<2x32xf32>, vector<2x32xf32> -> vector<2x64xf32>
    %323 = arith.truncf %322 : vector<2x64xf32> to vector<2x64xbf16>
    %cst_51 = arith.constant dense<0.000000e+00> : vector<2x128xf32>
    %324 = tpu.matmul %323, %1, %cst_51 {dimension_numbers = #tpu.dot_dimension_numbers<[1], [0], [0], [1], [0, 0, 1, 1], [], []>} : vector<2x64xbf16>, vector<64x128xbf16>, vector<2x128xf32> -> vector<2x128xf32>
    %325 = arith.addf %324, %4 : vector<2x128xf32>
    %326 = vector.extract_strided_slice %325 {offsets = [0, 0], sizes = [2, 96], strides = [1, 1]} : vector<2x128xf32> to vector<2x96xf32>
    %327 = arith.negf %326 : vector<2x96xf32>
    %328 = math.exp %327 : vector<2x96xf32>
    %cst_52 = arith.constant 1.000000e+00 : f32
    %329 = vector.broadcast %cst_52 : f32 to vector<2x96xf32>
    %330 = arith.addf %329, %328 : vector<2x96xf32>
    %331 = arith.divf %329, %330 : vector<2x96xf32>
    %332 = vector.extract_strided_slice %331 {offsets = [0, 0], sizes = [2, 32], strides = [1, 1]} : vector<2x96xf32> to vector<2x32xf32>
    %333 = vector.extract_strided_slice %331 {offsets = [0, 32], sizes = [2, 32], strides = [1, 1]} : vector<2x96xf32> to vector<2x32xf32>
    %334 = vector.extract_strided_slice %331 {offsets = [0, 64], sizes = [2, 32], strides = [1, 1]} : vector<2x96xf32> to vector<2x32xf32>
    %335 = vector.extract_strided_slice %325 {offsets = [0, 96], sizes = [2, 32], strides = [1, 1]} : vector<2x128xf32> to vector<2x32xf32>
    %336 = math.tanh %335 : vector<2x32xf32>
    %337 = arith.mulf %333, %297 : vector<2x32xf32>
    %338 = arith.mulf %332, %336 : vector<2x32xf32>
    %339 = arith.addf %337, %338 : vector<2x32xf32>
    %340 = math.tanh %339 : vector<2x32xf32>
    %341 = arith.mulf %334, %340 : vector<2x32xf32>
    %c8_i32 = arith.constant 8 : i32
    %cst_53 = arith.constant dense<0.000000e+00> : vector<2xf32>
    %342 = vector.multi_reduction <add>, %341, %cst_53 [1] : vector<2x32xf32> to vector<2xf32>
    %343 = vector.shape_cast %342 : vector<2xf32> to vector<2x1xf32>
    %cst_54 = arith.constant 3.200000e+01 : f32
    %344 = vector.broadcast %cst_54 : f32 to vector<2x1xf32>
    %345 = arith.divf %343, %344 : vector<2x1xf32>
    %346 = vector.broadcast %345 : vector<2x1xf32> to vector<2x32xf32>
    %347 = arith.subf %341, %346 : vector<2x32xf32>
    %348 = arith.mulf %347, %347 : vector<2x32xf32>
    %cst_55 = arith.constant dense<0.000000e+00> : vector<2xf32>
    %349 = vector.multi_reduction <add>, %348, %cst_55 [1] : vector<2x32xf32> to vector<2xf32>
    %350 = vector.shape_cast %349 : vector<2xf32> to vector<2x1xf32>
    %cst_56 = arith.constant 3.200000e+01 : f32
    %351 = vector.broadcast %cst_56 : f32 to vector<2x1xf32>
    %352 = arith.divf %350, %351 : vector<2x1xf32>
    %353 = vector.broadcast %345 : vector<2x1xf32> to vector<2x32xf32>
    %354 = arith.subf %341, %353 : vector<2x32xf32>
    %cst_57 = arith.constant 9.99999974E-6 : f32
    %355 = vector.broadcast %cst_57 : f32 to vector<2x1xf32>
    %356 = arith.addf %352, %355 : vector<2x1xf32>
    %357 = math.rsqrt %356 : vector<2x1xf32>
    %358 = vector.broadcast %357 : vector<2x1xf32> to vector<2x32xf32>
    %359 = arith.mulf %354, %358 : vector<2x32xf32>
    %c0_58 = arith.constant 0 : index
    %c0_59 = arith.constant 0 : index
    %360 = vector.load %arg5[%c0_58, %c0_59] : memref<1x32xf32, #tpu.memory_space<vmem>>, vector<1x32xf32>
    %361 = vector.broadcast %360 : vector<1x32xf32> to vector<2x32xf32>
    %362 = arith.mulf %359, %361 : vector<2x32xf32>
    %c0_60 = arith.constant 0 : index
    %c0_61 = arith.constant 0 : index
    %363 = vector.load %arg6[%c0_60, %c0_61] : memref<1x32xf32, #tpu.memory_space<vmem>>, vector<1x32xf32>
    %364 = vector.broadcast %363 : vector<1x32xf32> to vector<2x32xf32>
    %365 = arith.addf %362, %364 : vector<2x32xf32>
    %c0_62 = arith.constant 0 : index
    %c0_63 = arith.constant 0 : index
    %366 = vector.load %arg7[%c0_62, %c0_63] : memref<2x32xf32, #tpu.memory_space<vmem>>, vector<2x32xf32>
    tpu.vector_store %arg7[%c0_62, %c0_63], %365 {strides = array<i32>} : memref<2x32xf32, #tpu.memory_space<vmem>>, vector<2x32xf32>,
    return
  }
  func.func @transform_0(%arg0: i32) -> (i32, i32, i32) {
    %c0_i32 = arith.constant 0 : i32
    %c0_i32_0 = arith.constant 0 : i32
    %c0_i32_1 = arith.constant 0 : i32
    return %c0_i32, %arg0, %c0_i32_0 : i32, i32, i32
  }
  func.func @transform_1(%arg0: i32) -> (i32, i32) {
    %c0_i32 = arith.constant 0 : i32
    %c0_i32_0 = arith.constant 0 : i32
    %c0_i32_1 = arith.constant 0 : i32
    return %c0_i32, %c0_i32_0 : i32, i32
  }
  func.func @transform_2(%arg0: i32) -> (i32, i32) {
    %c0_i32 = arith.constant 0 : i32
    %c0_i32_0 = arith.constant 0 : i32
    %c0_i32_1 = arith.constant 0 : i32
    return %c0_i32, %c0_i32_0 : i32, i32
  }
  func.func @transform_3(%arg0: i32) -> (i32, i32) {
    %c0_i32 = arith.constant 0 : i32
    %c0_i32_0 = arith.constant 0 : i32
    %c0_i32_1 = arith.constant 0 : i32
    return %c0_i32, %c0_i32_0 : i32, i32
  }
  func.func @transform_4(%arg0: i32) -> (i32, i32) {
    %c0_i32 = arith.constant 0 : i32
    %c0_i32_0 = arith.constant 0 : i32
    %c0_i32_1 = arith.constant 0 : i32
    return %c0_i32, %c0_i32_0 : i32, i32
  }
  func.func @transform_5(%arg0: i32) -> (i32, i32) {
    %c0_i32 = arith.constant 0 : i32
    %c0_i32_0 = arith.constant 0 : i32
    %c0_i32_1 = arith.constant 0 : i32
    return %c0_i32, %c0_i32_0 : i32, i32
  }
  func.func @transform_6(%arg0: i32) -> (i32, i32) {
    %c0_i32 = arith.constant 0 : i32
    %c0_i32_0 = arith.constant 0 : i32
    return %arg0, %c0_i32 : i32, i32
  }
}

</mosaic_0001>

<llo_original>
// kernel: lstm_encoder_forward.1
$region0: #{lstm_encoder_forward.1}
  #allocation0 [shape = 'u32[]', space=smem, size = 0x4, offset = 0x4, fixed_abs, tag = 'smem constant byte address 0x4 - core index']
  #allocation1 [shape = 'u32[144,128]{1,0:T(1,128)}', space=vmem, size = 0x12000, scoped, tag = 'internal scratch']
  %s0 = inlined_call_operand.vmem [shape: f32[8,2,128], index: 0, kind: input, shape index: {}]
  %s1 = inlined_call_operand.vmem [shape: bf16[32,128], index: 1, kind: input, shape index: {}]
  %s2 = inlined_call_operand.vmem [shape: bf16[64,128], index: 2, kind: input, shape index: {}]
  %s3 = inlined_call_operand.vmem [shape: f32[1,128], index: 3, kind: input, shape index: {}]
  %s4 = inlined_call_operand.vmem [shape: f32[1,32], index: 4, kind: input, shape index: {}]
  %s5 = inlined_call_operand.vmem [shape: f32[1,32], index: 5, kind: input, shape index: {}]
  %s6 = inlined_call_operand.hbm [shape: f32[2,32], index: 6, kind: output, shape index: {}]
  %s7 = sld [smem:[#allocation0]]
  $region34: #{lstm_encoder_forward.1} parent=0
    _
  %s9 = ssub.s32 1, %s7
  %s10 = scalar_select 0, %s9, %s7
  $region1: #{lstm_encoder_forward.1} parent=0
    #allocation2 [shape = 'u8[1024]{0}', space=vmem, size = 0x400, scoped, tag = 'output window, operand 0, single buffered']
    #allocation3 [shape = 's32[1]{0}', space=sflag, size = 0x4, scoped, tag = 'scoped memory for lstm_encoder_forward.1']
    %11 = vsyncpa [#allocation3], 0
    // Predicated region
    $region2: #{lstm_encoder_forward.1} parent=1 // pred_check
      _
    $region3: #{lstm_encoder_forward.1} parent=1 // pred_check_branch
      %13 = sbr.rel (0) target = $region5
    $region4: #{lstm_encoder_forward.1} parent=1 // pred_region
      _
    $region5: #{lstm_encoder_forward.1} parent=1 // pred_fallthru
      _
    // Predicated region
    $region6: #{lstm_encoder_forward.1} parent=1 // pred_check
      _
    $region7: #{lstm_encoder_forward.1} parent=1 // pred_check_branch
      %15 = sbr.rel (0) target = $region9
    $region8: #{lstm_encoder_forward.1} parent=1 // pred_region
      _
    $region9: #{lstm_encoder_forward.1} parent=1 // pred_fallthru
      _
    // Predicated region
    $region10: #{lstm_encoder_forward.1} parent=1 // pred_check
      _
    $region11: #{lstm_encoder_forward.1} parent=1 // pred_check_branch
      %17 = sbr.rel (0) target = $region13
    $region12: #{lstm_encoder_forward.1} parent=1 // pred_region
      _
    $region13: #{lstm_encoder_forward.1} parent=1 // pred_fallthru
      _
    // Predicated region
    $region14: #{lstm_encoder_forward.1} parent=1 // pred_check
      _
    $region15: #{lstm_encoder_forward.1} parent=1 // pred_check_branch
      %19 = sbr.rel (0) target = $region17
    $region16: #{lstm_encoder_forward.1} parent=1 // pred_region
      _
    $region17: #{lstm_encoder_forward.1} parent=1 // pred_fallthru
      _
    // Predicated region
    $region18: #{lstm_encoder_forward.1} parent=1 // pred_check
      _
    $region19: #{lstm_encoder_forward.1} parent=1 // pred_check_branch
      %21 = sbr.rel (0) target = $region21
    $region20: #{lstm_encoder_forward.1} parent=1 // pred_region
      _
    $region21: #{lstm_encoder_forward.1} parent=1 // pred_fallthru
      _
    // Predicated region
    $region22: #{lstm_encoder_forward.1} parent=1 // pred_check
      _
    $region23: #{lstm_encoder_forward.1} parent=1 // pred_check_branch
      %23 = sbr.rel (0) target = $region25
    $region24: #{lstm_encoder_forward.1} parent=1 // pred_region
      _
    $region25: #{lstm_encoder_forward.1} parent=1 // pred_fallthru
      _
    %v25 = vld [vmem:[%s1] sm:$0xf]
    %v26 = vld [vmem:[%s1 + $0x4] sm:$0xf]
    %v27 = vld [vmem:[%s1 + $0x8] sm:$0xf]
    %v28 = vld [vmem:[%s1 + $0xc] sm:$0xf]
    %v29 = vld [vmem:[%s2] sm:$0xf]
    %v30 = vld [vmem:[%s2 + $0x4] sm:$0xf]
    %v31 = vld [vmem:[%s2 + $0x8] sm:$0xf]
    %v32 = vld [vmem:[%s2 + $0xc] sm:$0xf]
    %v33 = vld [vmem:[%s2 + $0x10] sm:$0xf]
    %v34 = vld [vmem:[%s2 + $0x14] sm:$0xf]
    %v35 = vld [vmem:[%s2 + $0x18] sm:$0xf]
    %v36 = vld [vmem:[%s2 + $0x1c] sm:$0xf]
    %v37 = vld [vmem:[%s3] sm:$0x1]
    %v39 = vlaneseq
    %v40 = vshrl.u32 %v39, 7
    %v41 = vsub.s32 0, %v40
    %v42 = vrot.slane %v37, %v41
    %v44 = vld [vmem:[%s0] sm:$0x3]
    %v49 = vunpack.c.l.b16 %v25
    %v50 = vunpack.c.l.b16 %v26
    %v51 = vunpack.c.l.b16 %v27
    %v52 = vunpack.c.l.b16 %v28
    %v53 = vpack.c.b16 %v50, %v49
    %v54 = vpack.c.b16 %v52, %v51
    %vm57 = vcmask 261120
    %v59 = vsel %vm57, 0, 0
    %61 = vmatprep.subr.bf16.mxu0 0
    %62 = vmatpush1.bf16.msra.mxu0 %v53
    %63 = vmatprep.subr.bf16.mxu0 0
    %64 = vmatpush1.bf16.msra.mxu0 %v54
    %65 = vmatprep.subr.bf16.mxu0 0
    %66 = vmatpush1.bf16.msra.mxu0 0
    %67 = vmatprep.subr.bf16.mxu0 0
    %68 = vmatpush1.bf16.msra.mxu0 0
    %69 = vmatprep.subr.bf16.mxu0 0
    %70 = vmatpush1.bf16.msra.mxu0 0
    %71 = vmatprep.subr.bf16.mxu0 0
    %72 = vmatpush1.bf16.msra.mxu0 0
    %73 = vmatprep.subr.bf16.mxu0 0
    %74 = vmatpush1.bf16.msra.mxu0 0
    %75 = vmatprep.subr.bf16.mxu0 0
    %76 = vmatpush1.bf16.msra.mxu0 0
    %77 = vmatprep.subr.bf16.mxu0 0
    %78 = vmatpush1.bf16.msra.mxu0 0
    %79 = vmatprep.subr.bf16.mxu0 0
    %80 = vmatpush1.bf16.msra.mxu0 0
    %81 = vmatprep.subr.bf16.mxu0 0
    %82 = vmatpush1.bf16.msra.mxu0 0
    %83 = vmatprep.subr.bf16.mxu0 0
    %84 = vmatpush1.bf16.msra.mxu0 0
    %85 = vmatprep.subr.bf16.mxu0 0
    %86 = vmatpush1.bf16.msra.mxu0 0
    %87 = vmatprep.subr.bf16.mxu0 0
    %88 = vmatpush1.bf16.msra.mxu0 0
    %89 = vmatprep.subr.bf16.mxu0 0
    %90 = vmatpush1.bf16.msra.mxu0 0
    %91 = vmatprep.subr.bf16.mxu0 0
    %92 = vmatpush1.bf16.msra.mxu0 0
    %93 = vmatprep.mubr.bf16.mxu0 0
    %94 = vmatmul.mubr.bf16.gmra.mrb[0].mxu0 %v59
    %v95 = vpop.f32.mrb[0].mxu0
    %v96 = vadd.f32 0.0, %v95
    %v97 = vpop.f32.mrb[0].mxu0
    %v98 = vpop.f32.mrb[0].mxu0
    %v99 = vpop.f32.mrb[0].mxu0
    %100 = vdwg.mxu0
    %v101 = vadd.f32 %v44, %v96
    %v102 = vxor.u32 %v101, 2147483648
    %v103 = vmul.f32 %v102, 1.442695
    %v104 = vpow.pop %v103
    %v105 = vadd.f32 %v104, 1.0
    %v106 = vrcp.pop %v105
    %v107 = vmul.f32 1.0, %v106
    %v108 = vtanh.pop %v101
    %v109 = vmul.f32 %v107, 0.0
    %111 = vrot.lane.b32.xlu0 %v108, 32
    %v112 = vpop.permute.xlu0 %111
    %v114 = vmul.f32 %v107, %v112
    %116 = vrot.lane.b32.xlu0 %v114, 32
    %v117 = vpop.permute.xlu0 %116
    %v119 = vadd.f32 %v109, %v117
    %v120 = vtanh.pop %v119
    %122 = vrot.lane.b32.xlu0 %v120, 32
    %v123 = vpop.permute.xlu0 %122
    %v125 = vmul.f32 %v107, %v123
    %127 = vrot.lane.b32.xlu0 %v125, 64
    %v128 = vpop.permute.xlu0 %127
    %v130 = vsel %vm57, %v128, 0.0
    %v131 = vpack.c.bf16 %v130, %v130
    %v140 = vunpack.c.l.b16 %v29
    %v141 = vunpack.c.l.b16 %v30
    %v142 = vunpack.c.l.b16 %v31
    %v143 = vunpack.c.l.b16 %v32
    %v144 = vunpack.c.l.b16 %v33
    %v145 = vunpack.c.l.b16 %v34
    %v146 = vunpack.c.l.b16 %v35
    %v147 = vunpack.c.l.b16 %v36
    %v148 = vpack.c.b16 %v141, %v140
    %v149 = vpack.c.b16 %v143, %v142
    %v150 = vpack.c.b16 %v145, %v144
    %v151 = vpack.c.b16 %v147, %v146
    %vm156 = vcmask 523264
    %v158 = vsel %vm156, %v131, 0
    %160 = vmatprep.subr.bf16.mxu0 0
    %161 = vmatpush1.bf16.msra.mxu0 %v148
    %162 = vmatprep.subr.bf16.mxu0 0
    %163 = vmatpush1.bf16.msra.mxu0 %v149
    %164 = vmatprep.subr.bf16.mxu0 0
    %165 = vmatpush1.bf16.msra.mxu0 %v150
    %166 = vmatprep.subr.bf16.mxu0 0
    %167 = vmatpush1.bf16.msra.mxu0 %v151
    %168 = vmatprep.subr.bf16.mxu0 0
    %169 = vmatpush1.bf16.msra.mxu0 0
    %170 = vmatprep.subr.bf16.mxu0 0
    %171 = vmatpush1.bf16.msra.mxu0 0
    %172 = vmatprep.subr.bf16.mxu0 0
    %173 = vmatpush1.bf16.msra.mxu0 0
    %174 = vmatprep.subr.bf16.mxu0 0
    %175 = vmatpush1.bf16.msra.mxu0 0
    %176 = vmatprep.subr.bf16.mxu0 0
    %177 = vmatpush1.bf16.msra.mxu0 0
    %178 = vmatprep.subr.bf16.mxu0 0
    %179 = vmatpush1.bf16.msra.mxu0 0
    %180 = vmatprep.subr.bf16.mxu0 0
    %181 = vmatpush1.bf16.msra.mxu0 0
    %182 = vmatprep.subr.bf16.mxu0 0
    %183 = vmatpush1.bf16.msra.mxu0 0
    %184 = vmatprep.subr.bf16.mxu0 0
    %185 = vmatpush1.bf16.msra.mxu0 0
    %186 = vmatprep.subr.bf16.mxu0 0
    %187 = vmatpush1.bf16.msra.mxu0 0
    %188 = vmatprep.subr.bf16.mxu0 0
    %189 = vmatpush1.bf16.msra.mxu0 0
    %190 = vmatprep.subr.bf16.mxu0 0
    %191 = vmatpush1.bf16.msra.mxu0 0
    %192 = vmatprep.mubr.bf16.mxu0 0
    %193 = vmatmul.mubr.bf16.gmra.mrb[0].mxu0 %v158
    %v194 = vpop.f32.mrb[0].mxu0
    %v195 = vadd.f32 %v42, %v194
    %v196 = vpop.f32.mrb[0].mxu0
    %v197 = vpop.f32.mrb[0].mxu0
    %v198 = vpop.f32.mrb[0].mxu0
    %199 = vdwg.mxu0
    %v200 = vxor.u32 %v195, 2147483648
    %v201 = vmul.f32 %v200, 1.442695
    %v202 = vpow.pop %v201
    %v203 = vadd.f32 %v202, 1.0
    %v204 = vrcp.pop %v203
    %v205 = vmul.f32 1.0, %v204
    %v206 = vtanh.pop %v195
    %v207 = vmul.f32 %v205, 0.0
    %209 = vrot.lane.b32.xlu0 %v206, 32
    %v210 = vpop.permute.xlu0 %209
    %v212 = vmul.f32 %v205, %v210
    %214 = vrot.lane.b32.xlu0 %v212, 32
    %v215 = vpop.permute.xlu0 %214
    %v217 = vadd.f32 %v207, %v215
    %v218 = vtanh.pop %v217
    %220 = vrot.lane.b32.xlu0 %v218, 32
    %v221 = vpop.permute.xlu0 %220
    %v223 = vmul.f32 %v205, %v221
    %s224 = scalar_lea.vmem %s0, 2
    %v225 = vld [vmem:[%s224] sm:$0x3]
    %v226 = vpack.c.bf16 %v125, %v125
    %228 = vrot.lane.b32.xlu0 %v226, 64
    %v229 = vpop.permute.xlu0 %228
    %v231 = vsel %vm57, %v229, 0
    %233 = vmatprep.subr.bf16.mxu0 0
    %234 = vmatpush1.bf16.msra.mxu0 %v53
    %235 = vmatprep.subr.bf16.mxu0 0
    %236 = vmatpush1.bf16.msra.mxu0 %v54
    %237 = vmatprep.subr.bf16.mxu0 0
    %238 = vmatpush1.bf16.msra.mxu0 0
    %239 = vmatprep.subr.bf16.mxu0 0
    %240 = vmatpush1.bf16.msra.mxu0 0
    %241 = vmatprep.subr.bf16.mxu0 0
    %242 = vmatpush1.bf16.msra.mxu0 0
    %243 = vmatprep.subr.bf16.mxu0 0
    %244 = vmatpush1.bf16.msra.mxu0 0
    %245 = vmatprep.subr.bf16.mxu0 0
    %246 = vmatpush1.bf16.msra.mxu0 0
    %247 = vmatprep.subr.bf16.mxu0 0
    %248 = vmatpush1.bf16.msra.mxu0 0
    %249 = vmatprep.subr.bf16.mxu0 0
    %250 = vmatpush1.bf16.msra.mxu0 0
    %251 = vmatprep.subr.bf16.mxu0 0
    %252 = vmatpush1.bf16.msra.mxu0 0
    %253 = vmatprep.subr.bf16.mxu0 0
    %254 = vmatpush1.bf16.msra.mxu0 0
    %255 = vmatprep.subr.bf16.mxu0 0
    %256 = vmatpush1.bf16.msra.mxu0 0
    %257 = vmatprep.subr.bf16.mxu0 0
    %258 = vmatpush1.bf16.msra.mxu0 0
    %259 = vmatprep.subr.bf16.mxu0 0
    %260 = vmatpush1.bf16.msra.mxu0 0
    %261 = vmatprep.subr.bf16.mxu0 0
    %262 = vmatpush1.bf16.msra.mxu0 0
    %263 = vmatprep.subr.bf16.mxu0 0
    %264 = vmatpush1.bf16.msra.mxu0 0
    %265 = vmatprep.mubr.bf16.mxu0 0
    %266 = vmatmul.mubr.bf16.gmra.mrb[0].mxu0 %v231
    %v267 = vpop.f32.mrb[0].mxu0
    %v268 = vadd.f32 0.0, %v267
    %v269 = vpop.f32.mrb[0].mxu0
    %v270 = vpop.f32.mrb[0].mxu0
    %v271 = vpop.f32.mrb[0].mxu0
    %272 = vdwg.mxu0
    %v273 = vadd.f32 %v225, %v268
    %v274 = vxor.u32 %v273, 2147483648
    %v275 = vmul.f32 %v274, 1.442695
    %v276 = vpow.pop %v275
    %v277 = vadd.f32 %v276, 1.0
    %v278 = vrcp.pop %v277
    %v279 = vmul.f32 1.0, %v278
    %v280 = vtanh.pop %v273
    %v281 = vmul.f32 %v279, %v119
    %283 = vrot.lane.b32.xlu0 %v280, 32
    %v284 = vpop.permute.xlu0 %283
    %v286 = vmul.f32 %v279, %v284
    %288 = vrot.lane.b32.xlu0 %v286, 32
    %v289 = vpop.permute.xlu0 %288
    %v291 = vadd.f32 %v281, %v289
    %v292 = vtanh.pop %v291
    %294 = vrot.lane.b32.xlu0 %v292, 32
    %v295 = vpop.permute.xlu0 %294
    %v297 = vmul.f32 %v279, %v295
    %299 = vrot.lane.b32.xlu0 %v297, 64
    %v300 = vpop.permute.xlu0 %299
    %303 = vrot.lane.b32.xlu0 %v223, 96
    %v304 = vpop.permute.xlu0 %303
    %v306 = vsel %vm57, %v300, %v304
    %v307 = vpack.c.bf16 %v306, %v306
    %v309 = vsel %vm156, %v307, 0
    %311 = vmatprep.subr.bf16.mxu0 0
    %312 = vmatpush1.bf16.msra.mxu0 %v148
    %313 = vmatprep.subr.bf16.mxu0 0
    %314 = vmatpush1.bf16.msra.mxu0 %v149
    %315 = vmatprep.subr.bf16.mxu0 0
    %316 = vmatpush1.bf16.msra.mxu0 %v150
    %317 = vmatprep.subr.bf16.mxu0 0
    %318 = vmatpush1.bf16.msra.mxu0 %v151
    %319 = vmatprep.subr.bf16.mxu0 0
    %320 = vmatpush1.bf16.msra.mxu0 0
    %321 = vmatprep.subr.bf16.mxu0 0
    %322 = vmatpush1.bf16.msra.mxu0 0
    %323 = vmatprep.subr.bf16.mxu0 0
    %324 = vmatpush1.bf16.msra.mxu0 0
    %325 = vmatprep.subr.bf16.mxu0 0
    %326 = vmatpush1.bf16.msra.mxu0 0
    %327 = vmatprep.subr.bf16.mxu0 0
    %328 = vmatpush1.bf16.msra.mxu0 0
    %329 = vmatprep.subr.bf16.mxu0 0
    %330 = vmatpush1.bf16.msra.mxu0 0
    %331 = vmatprep.subr.bf16.mxu0 0
    %332 = vmatpush1.bf16.msra.mxu0 0
    %333 = vmatprep.subr.bf16.mxu0 0
    %334 = vmatpush1.bf16.msra.mxu0 0
    %335 = vmatprep.subr.bf16.mxu0 0
    %336 = vmatpush1.bf16.msra.mxu0 0
    %337 = vmatprep.subr.bf16.mxu0 0
    %338 = vmatpush1.bf16.msra.mxu0 0
    %339 = vmatprep.subr.bf16.mxu0 0
    %340 = vmatpush1.bf16.msra.mxu0 0
    %341 = vmatprep.subr.bf16.mxu0 0
    %342 = vmatpush1.bf16.msra.mxu0 0
    %343 = vmatprep.mubr.bf16.mxu0 0
    %344 = vmatmul.mubr.bf16.gmra.mrb[0].mxu0 %v309
    %v345 = vpop.f32.mrb[0].mxu0
    %v346 = vadd.f32 %v42, %v345
    %v347 = vpop.f32.mrb[0].mxu0
    %v348 = vpop.f32.mrb[0].mxu0
    %v349 = vpop.f32.mrb[0].mxu0
    %350 = vdwg.mxu0
    %v351 = vxor.u32 %v346, 2147483648
    %v352 = vmul.f32 %v351, 1.442695
    %v353 = vpow.pop %v352
    %v354 = vadd.f32 %v353, 1.0
    %v355 = vrcp.pop %v354
    %v356 = vmul.f32 1.0, %v355
    %v357 = vtanh.pop %v346
    %v358 = vmul.f32 %v356, %v217
    %360 = vrot.lane.b32.xlu0 %v357, 32
    %v361 = vpop.permute.xlu0 %360
    %v363 = vmul.f32 %v356, %v361
    %365 = vrot.lane.b32.xlu0 %v363, 32
    %v366 = vpop.permute.xlu0 %365
    %v368 = vadd.f32 %v358, %v366
    %v369 = vtanh.pop %v368
    %371 = vrot.lane.b32.xlu0 %v369, 32
    %v372 = vpop.permute.xlu0 %371
    %v374 = vmul.f32 %v356, %v372
    %s375 = scalar_lea.vmem %s0, 4
    %v376 = vld [vmem:[%s375] sm:$0x3]
    %v377 = vpack.c.bf16 %v297, %v297
    %379 = vrot.lane.b32.xlu0 %v377, 64
    %v380 = vpop.permute.xlu0 %379
    %v382 = vsel %vm57, %v380, 0
    %384 = vmatprep.subr.bf16.mxu0 0
    %385 = vmatpush1.bf16.msra.mxu0 %v53
    %386 = vmatprep.subr.bf16.mxu0 0
    %387 = vmatpush1.bf16.msra.mxu0 %v54
    %388 = vmatprep.subr.bf16.mxu0 0
    %389 = vmatpush1.bf16.msra.mxu0 0
    %390 = vmatprep.subr.bf16.mxu0 0
    %391 = vmatpush1.bf16.msra.mxu0 0
    %392 = vmatprep.subr.bf16.mxu0 0
    %393 = vmatpush1.bf16.msra.mxu0 0
    %394 = vmatprep.subr.bf16.mxu0 0
    %395 = vmatpush1.bf16.msra.mxu0 0
    %396 = vmatprep.subr.bf16.mxu0 0
    %397 = vmatpush1.bf16.msra.mxu0 0
    %398 = vmatprep.subr.bf16.mxu0 0
    %399 = vmatpush1.bf16.msra.mxu0 0
    %400 = vmatprep.subr.bf16.mxu0 0
    %401 = vmatpush1.bf16.msra.mxu0 0
    %402 = vmatprep.subr.bf16.mxu0 0
    %403 = vmatpush1.bf16.msra.mxu0 0
    %404 = vmatprep.subr.bf16.mxu0 0
    %405 = vmatpush1.bf16.msra.mxu0 0
    %406 = vmatprep.subr.bf16.mxu0 0
    %407 = vmatpush1.bf16.msra.mxu0 0
    %408 = vmatprep.subr.bf16.mxu0 0
    %409 = vmatpush1.bf16.msra.mxu0 0
    %410 = vmatprep.subr.bf16.mxu0 0
    %411 = vmatpush1.bf16.msra.mxu0 0
    %412 = vmatprep.subr.bf16.mxu0 0
    %413 = vmatpush1.bf16.msra.mxu0 0
    %414 = vmatprep.subr.bf16.mxu0 0
    %415 = vmatpush1.bf16.msra.mxu0 0
    %416 = vmatprep.mubr.bf16.mxu0 0
    %417 = vmatmul.mubr.bf16.gmra.mrb[0].mxu0 %v382
    %v418 = vpop.f32.mrb[0].mxu0
    %v419 = vadd.f32 0.0, %v418
    %v420 = vpop.f32.mrb[0].mxu0
    %v421 = vpop.f32.mrb[0].mxu0
    %v422 = vpop.f32.mrb[0].mxu0
    %423 = vdwg.mxu0
    %v424 = vadd.f32 %v376, %v419
    %v425 = vxor.u32 %v424, 2147483648
    %v426 = vmul.f32 %v425, 1.442695
    %v427 = vpow.pop %v426
    %v428 = vadd.f32 %v427, 1.0
    %v429 = vrcp.pop %v428
    %v430 = vmul.f32 1.0, %v429
    %v431 = vtanh.pop %v424
    %v432 = vmul.f32 %v430, %v291
    %434 = vrot.lane.b32.xlu0 %v431, 32
    %v435 = vpop.permute.xlu0 %434
    %v437 = vmul.f32 %v430, %v435
    %439 = vrot.lane.b32.xlu0 %v437, 32
    %v440 = vpop.permute.xlu0 %439
    %v442 = vadd.f32 %v432, %v440
    %v443 = vtanh.pop %v442
    %445 = vrot.lane.b32.xlu0 %v443, 32
    %v446 = vpop.permute.xlu0 %445
    %v448 = vmul.f32 %v430, %v446
    %450 = vrot.lane.b32.xlu0 %v448, 64
    %v451 = vpop.permute.xlu0 %450
    %454 = vrot.lane.b32.xlu0 %v374, 96
    %v455 = vpop.permute.xlu0 %454
    %v457 = vsel %vm57, %v451, %v455
    %v458 = vpack.c.bf16 %v457, %v457
    %v460 = vsel %vm156, %v458, 0
    %462 = vmatprep.subr.bf16.mxu0 0
    %463 = vmatpush1.bf16.msra.mxu0 %v148
    %464 = vmatprep.subr.bf16.mxu0 0
    %465 = vmatpush1.bf16.msra.mxu0 %v149
    %466 = vmatprep.subr.bf16.mxu0 0
    %467 = vmatpush1.bf16.msra.mxu0 %v150
    %468 = vmatprep.subr.bf16.mxu0 0
    %469 = vmatpush1.bf16.msra.mxu0 %v151
    %470 = vmatprep.subr.bf16.mxu0 0
    %471 = vmatpush1.bf16.msra.mxu0 0
    %472 = vmatprep.subr.bf16.mxu0 0
    %473 = vmatpush1.bf16.msra.mxu0 0
    %474 = vmatprep.subr.bf16.mxu0 0
    %475 = vmatpush1.bf16.msra.mxu0 0
    %476 = vmatprep.subr.bf16.mxu0 0
    %477 = vmatpush1.bf16.msra.mxu0 0
    %478 = vmatprep.subr.bf16.mxu0 0
    %479 = vmatpush1.bf16.msra.mxu0 0
    %480 = vmatprep.subr.bf16.mxu0 0
    %481 = vmatpush1.bf16.msra.mxu0 0
    %482 = vmatprep.subr.bf16.mxu0 0
    %483 = vmatpush1.bf16.msra.mxu0 0
    %484 = vmatprep.subr.bf16.mxu0 0
    %485 = vmatpush1.bf16.msra.mxu0 0
    %486 = vmatprep.subr.bf16.mxu0 0
    %487 = vmatpush1.bf16.msra.mxu0 0
    %488 = vmatprep.subr.bf16.mxu0 0
    %489 = vmatpush1.bf16.msra.mxu0 0
    %490 = vmatprep.subr.bf16.mxu0 0
    %491 = vmatpush1.bf16.msra.mxu0 0
    %492 = vmatprep.subr.bf16.mxu0 0
    %493 = vmatpush1.bf16.msra.mxu0 0
    %494 = vmatprep.mubr.bf16.mxu0 0
    %495 = vmatmul.mubr.bf16.gmra.mrb[0].mxu0 %v460
    %v496 = vpop.f32.mrb[0].mxu0
    %v497 = vadd.f32 %v42, %v496
    %v498 = vpop.f32.mrb[0].mxu0
    %v499 = vpop.f32.mrb[0].mxu0
    %v500 = vpop.f32.mrb[0].mxu0
    %501 = vdwg.mxu0
    %v502 = vxor.u32 %v497, 2147483648
    %v503 = vmul.f32 %v502, 1.442695
    %v504 = vpow.pop %v503
    %v505 = vadd.f32 %v504, 1.0
    %v506 = vrcp.pop %v505
    %v507 = vmul.f32 1.0, %v506
    %v508 = vtanh.pop %v497
    %v509 = vmul.f32 %v507, %v368
    %511 = vrot.lane.b32.xlu0 %v508, 32
    %v512 = vpop.permute.xlu0 %511
    %v514 = vmul.f32 %v507, %v512
    %516 = vrot.lane.b32.xlu0 %v514, 32
    %v517 = vpop.permute.xlu0 %516
    %v519 = vadd.f32 %v509, %v517
    %v520 = vtanh.pop %v519
    %522 = vrot.lane.b32.xlu0 %v520, 32
    %v523 = vpop.permute.xlu0 %522
    %v525 = vmul.f32 %v507, %v523
    %s526 = scalar_lea.vmem %s0, 6
    %v527 = vld [vmem:[%s526] sm:$0x3]
    %v528 = vpack.c.bf16 %v448, %v448
    %530 = vrot.lane.b32.xlu0 %v528, 64
    %v531 = vpop.permute.xlu0 %530
    %v533 = vsel %vm57, %v531, 0
    %535 = vmatprep.subr.bf16.mxu0 0
    %536 = vmatpush1.bf16.msra.mxu0 %v53
    %537 = vmatprep.subr.bf16.mxu0 0
    %538 = vmatpush1.bf16.msra.mxu0 %v54
    %539 = vmatprep.subr.bf16.mxu0 0
    %540 = vmatpush1.bf16.msra.mxu0 0
    %541 = vmatprep.subr.bf16.mxu0 0
    %542 = vmatpush1.bf16.msra.mxu0 0
    %543 = vmatprep.subr.bf16.mxu0 0
    %544 = vmatpush1.bf16.msra.mxu0 0
    %545 = vmatprep.subr.bf16.mxu0 0
    %546 = vmatpush1.bf16.msra.mxu0 0
    %547 = vmatprep.subr.bf16.mxu0 0
    %548 = vmatpush1.bf16.msra.mxu0 0
    %549 = vmatprep.subr.bf16.mxu0 0
    %550 = vmatpush1.bf16.msra.mxu0 0
    %551 = vmatprep.subr.bf16.mxu0 0
    %552 = vmatpush1.bf16.msra.mxu0 0
    %553 = vmatprep.subr.bf16.mxu0 0
    %554 = vmatpush1.bf16.msra.mxu0 0
    %555 = vmatprep.subr.bf16.mxu0 0
    %556 = vmatpush1.bf16.msra.mxu0 0
    %557 = vmatprep.subr.bf16.mxu0 0
    %558 = vmatpush1.bf16.msra.mxu0 0
    %559 = vmatprep.subr.bf16.mxu0 0
    %560 = vmatpush1.bf16.msra.mxu0 0
    %561 = vmatprep.subr.bf16.mxu0 0
    %562 = vmatpush1.bf16.msra.mxu0 0
    %563 = vmatprep.subr.bf16.mxu0 0
    %564 = vmatpush1.bf16.msra.mxu0 0
    %565 = vmatprep.subr.bf16.mxu0 0
    %566 = vmatpush1.bf16.msra.mxu0 0
    %567 = vmatprep.mubr.bf16.mxu0 0
    %568 = vmatmul.mubr.bf16.gmra.mrb[0].mxu0 %v533
    %v569 = vpop.f32.mrb[0].mxu0
    %v570 = vadd.f32 0.0, %v569
    %v571 = vpop.f32.mrb[0].mxu0
    %v572 = vpop.f32.mrb[0].mxu0
    %v573 = vpop.f32.mrb[0].mxu0
    %574 = vdwg.mxu0
    %v575 = vadd.f32 %v527, %v570
    %v576 = vxor.u32 %v575, 2147483648
    %v577 = vmul.f32 %v576, 1.442695
    %v578 = vpow.pop %v577
    %v579 = vadd.f32 %v578, 1.0
    %v580 = vrcp.pop %v579
    %v581 = vmul.f32 1.0, %v580
    %v582 = vtanh.pop %v575
    %v583 = vmul.f32 %v581, %v442
    %585 = vrot.lane.b32.xlu0 %v582, 32
    %v586 = vpop.permute.xlu0 %585
    %v588 = vmul.f32 %v581, %v586
    %590 = vrot.lane.b32.xlu0 %v588, 32
    %v591 = vpop.permute.xlu0 %590
    %v593 = vadd.f32 %v583, %v591
    %v594 = vtanh.pop %v593
    %596 = vrot.lane.b32.xlu0 %v594, 32
    %v597 = vpop.permute.xlu0 %596
    %v599 = vmul.f32 %v581, %v597
    %601 = vrot.lane.b32.xlu0 %v599, 64
    %v602 = vpop.permute.xlu0 %601
    %605 = vrot.lane.b32.xlu0 %v525, 96
    %v606 = vpop.permute.xlu0 %605
    %v608 = vsel %vm57, %v602, %v606
    %v609 = vpack.c.bf16 %v608, %v608
    %v611 = vsel %vm156, %v609, 0
    %613 = vmatprep.subr.bf16.mxu0 0
    %614 = vmatpush1.bf16.msra.mxu0 %v148
    %615 = vmatprep.subr.bf16.mxu0 0
    %616 = vmatpush1.bf16.msra.mxu0 %v149
    %617 = vmatprep.subr.bf16.mxu0 0
    %618 = vmatpush1.bf16.msra.mxu0 %v150
    %619 = vmatprep.subr.bf16.mxu0 0
    %620 = vmatpush1.bf16.msra.mxu0 %v151
    %621 = vmatprep.subr.bf16.mxu0 0
    %622 = vmatpush1.bf16.msra.mxu0 0
    %623 = vmatprep.subr.bf16.mxu0 0
    %624 = vmatpush1.bf16.msra.mxu0 0
    %625 = vmatprep.subr.bf16.mxu0 0
    %626 = vmatpush1.bf16.msra.mxu0 0
    %627 = vmatprep.subr.bf16.mxu0 0
    %628 = vmatpush1.bf16.msra.mxu0 0
    %629 = vmatprep.subr.bf16.mxu0 0
    %630 = vmatpush1.bf16.msra.mxu0 0
    %631 = vmatprep.subr.bf16.mxu0 0
    %632 = vmatpush1.bf16.msra.mxu0 0
    %633 = vmatprep.subr.bf16.mxu0 0
    %634 = vmatpush1.bf16.msra.mxu0 0
    %635 = vmatprep.subr.bf16.mxu0 0
    %636 = vmatpush1.bf16.msra.mxu0 0
    %637 = vmatprep.subr.bf16.mxu0 0
    %638 = vmatpush1.bf16.msra.mxu0 0
    %639 = vmatprep.subr.bf16.mxu0 0
    %640 = vmatpush1.bf16.msra.mxu0 0
    %641 = vmatprep.subr.bf16.mxu0 0
    %642 = vmatpush1.bf16.msra.mxu0 0
    %643 = vmatprep.subr.bf16.mxu0 0
    %644 = vmatpush1.bf16.msra.mxu0 0
    %645 = vmatprep.mubr.bf16.mxu0 0
    %646 = vmatmul.mubr.bf16.gmra.mrb[0].mxu0 %v611
    %v647 = vpop.f32.mrb[0].mxu0
    %v648 = vadd.f32 %v42, %v647
    %v649 = vpop.f32.mrb[0].mxu0
    %v650 = vpop.f32.mrb[0].mxu0
    %v651 = vpop.f32.mrb[0].mxu0
    %652 = vdwg.mxu0
    %v653 = vxor.u32 %v648, 2147483648
    %v654 = vmul.f32 %v653, 1.442695
    %v655 = vpow.pop %v654
    %v656 = vadd.f32 %v655, 1.0
    %v657 = vrcp.pop %v656
    %v658 = vmul.f32 1.0, %v657
    %v659 = vtanh.pop %v648
    %v660 = vmul.f32 %v658, %v519
    %662 = vrot.lane.b32.xlu0 %v659, 32
    %v663 = vpop.permute.xlu0 %662
    %v665 = vmul.f32 %v658, %v663
    %667 = vrot.lane.b32.xlu0 %v665, 32
    %v668 = vpop.permute.xlu0 %667
    %v670 = vadd.f32 %v660, %v668
    %v671 = vtanh.pop %v670
    %673 = vrot.lane.b32.xlu0 %v671, 32
    %v674 = vpop.permute.xlu0 %673
    %v676 = vmul.f32 %v658, %v674
    %s677 = scalar_lea.vmem %s0, 8
    %v678 = vld [vmem:[%s677] sm:$0x3]
    %v679 = vpack.c.bf16 %v599, %v599
    %681 = vrot.lane.b32.xlu0 %v679, 64
    %v682 = vpop.permute.xlu0 %681
    %v684 = vsel %vm57, %v682, 0
    %686 = vmatprep.subr.bf16.mxu0 0
    %687 = vmatpush1.bf16.msra.mxu0 %v53
    %688 = vmatprep.subr.bf16.mxu0 0
    %689 = vmatpush1.bf16.msra.mxu0 %v54
    %690 = vmatprep.subr.bf16.mxu0 0
    %691 = vmatpush1.bf16.msra.mxu0 0
    %692 = vmatprep.subr.bf16.mxu0 0
    %693 = vmatpush1.bf16.msra.mxu0 0
    %694 = vmatprep.subr.bf16.mxu0 0
    %695 = vmatpush1.bf16.msra.mxu0 0
    %696 = vmatprep.subr.bf16.mxu0 0
    %697 = vmatpush1.bf16.msra.mxu0 0
    %698 = vmatprep.subr.bf16.mxu0 0
    %699 = vmatpush1.bf16.msra.mxu0 0
    %700 = vmatprep.subr.bf16.mxu0 0
    %701 = vmatpush1.bf16.msra.mxu0 0
    %702 = vmatprep.subr.bf16.mxu0 0
    %703 = vmatpush1.bf16.msra.mxu0 0
    %704 = vmatprep.subr.bf16.mxu0 0
    %705 = vmatpush1.bf16.msra.mxu0 0
    %706 = vmatprep.subr.bf16.mxu0 0
    %707 = vmatpush1.bf16.msra.mxu0 0
    %708 = vmatprep.subr.bf16.mxu0 0
    %709 = vmatpush1.bf16.msra.mxu0 0
    %710 = vmatprep.subr.bf16.mxu0 0
    %711 = vmatpush1.bf16.msra.mxu0 0
    %712 = vmatprep.subr.bf16.mxu0 0
    %713 = vmatpush1.bf16.msra.mxu0 0
    %714 = vmatprep.subr.bf16.mxu0 0
    %715 = vmatpush1.bf16.msra.mxu0 0
    %716 = vmatprep.subr.bf16.mxu0 0
    %717 = vmatpush1.bf16.msra.mxu0 0
    %718 = vmatprep.mubr.bf16.mxu0 0
    %719 = vmatmul.mubr.bf16.gmra.mrb[0].mxu0 %v684
    %v720 = vpop.f32.mrb[0].mxu0
    %v721 = vadd.f32 0.0, %v720
    %v722 = vpop.f32.mrb[0].mxu0
    %v723 = vpop.f32.mrb[0].mxu0
    %v724 = vpop.f32.mrb[0].mxu0
    %725 = vdwg.mxu0
    %v726 = vadd.f32 %v678, %v721
    %v727 = vxor.u32 %v726, 2147483648
    %v728 = vmul.f32 %v727, 1.442695
    %v729 = vpow.pop %v728
    %v730 = vadd.f32 %v729, 1.0
    %v731 = vrcp.pop %v730
    %v732 = vmul.f32 1.0, %v731
    %v733 = vtanh.pop %v726
    %v734 = vmul.f32 %v732, %v593
    %736 = vrot.lane.b32.xlu0 %v733, 32
    %v737 = vpop.permute.xlu0 %736
    %v739 = vmul.f32 %v732, %v737
    %741 = vrot.lane.b32.xlu0 %v739, 32
    %v742 = vpop.permute.xlu0 %741
    %v744 = vadd.f32 %v734, %v742
    %v745 = vtanh.pop %v744
    %747 = vrot.lane.b32.xlu0 %v745, 32
    %v748 = vpop.permute.xlu0 %747
    %v750 = vmul.f32 %v732, %v748
    %752 = vrot.lane.b32.xlu0 %v750, 64
    %v753 = vpop.permute.xlu0 %752
    %756 = vrot.lane.b32.xlu0 %v676, 96
    %v757 = vpop.permute.xlu0 %756
    %v759 = vsel %vm57, %v753, %v757
    %v760 = vpack.c.bf16 %v759, %v759
    %v762 = vsel %vm156, %v760, 0
    %764 = vmatprep.subr.bf16.mxu0 0
    %765 = vmatpush1.bf16.msra.mxu0 %v148
    %766 = vmatprep.subr.bf16.mxu0 0
    %767 = vmatpush1.bf16.msra.mxu0 %v149
    %768 = vmatprep.subr.bf16.mxu0 0
    %769 = vmatpush1.bf16.msra.mxu0 %v150
    %770 = vmatprep.subr.bf16.mxu0 0
    %771 = vmatpush1.bf16.msra.mxu0 %v151
    %772 = vmatprep.subr.bf16.mxu0 0
    %773 = vmatpush1.bf16.msra.mxu0 0
    %774 = vmatprep.subr.bf16.mxu0 0
    %775 = vmatpush1.bf16.msra.mxu0 0
    %776 = vmatprep.subr.bf16.mxu0 0
    %777 = vmatpush1.bf16.msra.mxu0 0
    %778 = vmatprep.subr.bf16.mxu0 0
    %779 = vmatpush1.bf16.msra.mxu0 0
    %780 = vmatprep.subr.bf16.mxu0 0
    %781 = vmatpush1.bf16.msra.mxu0 0
    %782 = vmatprep.subr.bf16.mxu0 0
    %783 = vmatpush1.bf16.msra.mxu0 0
    %784 = vmatprep.subr.bf16.mxu0 0
    %785 = vmatpush1.bf16.msra.mxu0 0
    %786 = vmatprep.subr.bf16.mxu0 0
    %787 = vmatpush1.bf16.msra.mxu0 0
    %788 = vmatprep.subr.bf16.mxu0 0
    %789 = vmatpush1.bf16.msra.mxu0 0
    %790 = vmatprep.subr.bf16.mxu0 0
    %791 = vmatpush1.bf16.msra.mxu0 0
    %792 = vmatprep.subr.bf16.mxu0 0
    %793 = vmatpush1.bf16.msra.mxu0 0
    %794 = vmatprep.subr.bf16.mxu0 0
    %795 = vmatpush1.bf16.msra.mxu0 0
    %796 = vmatprep.mubr.bf16.mxu0 0
    %797 = vmatmul.mubr.bf16.gmra.mrb[0].mxu0 %v762
    %v798 = vpop.f32.mrb[0].mxu0
    %v799 = vadd.f32 %v42, %v798
    %v800 = vpop.f32.mrb[0].mxu0
    %v801 = vpop.f32.mrb[0].mxu0
    %v802 = vpop.f32.mrb[0].mxu0
    %803 = vdwg.mxu0
    %v804 = vxor.u32 %v799, 2147483648
    %v805 = vmul.f32 %v804, 1.442695
    %v806 = vpow.pop %v805
    %v807 = vadd.f32 %v806, 1.0
    %v808 = vrcp.pop %v807
    %v809 = vmul.f32 1.0, %v808
    %v810 = vtanh.pop %v799
    %v811 = vmul.f32 %v809, %v670
    %813 = vrot.lane.b32.xlu0 %v810, 32
    %v814 = vpop.permute.xlu0 %813
    %v816 = vmul.f32 %v809, %v814
    %818 = vrot.lane.b32.xlu0 %v816, 32
    %v819 = vpop.permute.xlu0 %818
    %v821 = vadd.f32 %v811, %v819
    %v822 = vtanh.pop %v821
    %824 = vrot.lane.b32.xlu0 %v822, 32
    %v825 = vpop.permute.xlu0 %824
    %v827 = vmul.f32 %v809, %v825
    %s828 = scalar_lea.vmem %s0, 10
    %v829 = vld [vmem:[%s828] sm:$0x3]
    %v830 = vpack.c.bf16 %v750, %v750
    %832 = vrot.lane.b32.xlu0 %v830, 64
    %v833 = vpop.permute.xlu0 %832
    %v835 = vsel %vm57, %v833, 0
    %837 = vmatprep.subr.bf16.mxu0 0
    %838 = vmatpush1.bf16.msra.mxu0 %v53
    %839 = vmatprep.subr.bf16.mxu0 0
    %840 = vmatpush1.bf16.msra.mxu0 %v54
    %841 = vmatprep.subr.bf16.mxu0 0
    %842 = vmatpush1.bf16.msra.mxu0 0
    %843 = vmatprep.subr.bf16.mxu0 0
    %844 = vmatpush1.bf16.msra.mxu0 0
    %845 = vmatprep.subr.bf16.mxu0 0
    %846 = vmatpush1.bf16.msra.mxu0 0
    %847 = vmatprep.subr.bf16.mxu0 0
    %848 = vmatpush1.bf16.msra.mxu0 0
    %849 = vmatprep.subr.bf16.mxu0 0
    %850 = vmatpush1.bf16.msra.mxu0 0
    %851 = vmatprep.subr.bf16.mxu0 0
    %852 = vmatpush1.bf16.msra.mxu0 0
    %853 = vmatprep.subr.bf16.mxu0 0
    %854 = vmatpush1.bf16.msra.mxu0 0
    %855 = vmatprep.subr.bf16.mxu0 0
    %856 = vmatpush1.bf16.msra.mxu0 0
    %857 = vmatprep.subr.bf16.mxu0 0
    %858 = vmatpush1.bf16.msra.mxu0 0
    %859 = vmatprep.subr.bf16.mxu0 0
    %860 = vmatpush1.bf16.msra.mxu0 0
    %861 = vmatprep.subr.bf16.mxu0 0
    %862 = vmatpush1.bf16.msra.mxu0 0
    %863 = vmatprep.subr.bf16.mxu0 0
    %864 = vmatpush1.bf16.msra.mxu0 0
    %865 = vmatprep.subr.bf16.mxu0 0
    %866 = vmatpush1.bf16.msra.mxu0 0
    %867 = vmatprep.subr.bf16.mxu0 0
    %868 = vmatpush1.bf16.msra.mxu0 0
    %869 = vmatprep.mubr.bf16.mxu0 0
    %870 = vmatmul.mubr.bf16.gmra.mrb[0].mxu0 %v835
    %v871 = vpop.f32.mrb[0].mxu0
    %v872 = vadd.f32 0.0, %v871
    %v873 = vpop.f32.mrb[0].mxu0
    %v874 = vpop.f32.mrb[0].mxu0
    %v875 = vpop.f32.mrb[0].mxu0
    %876 = vdwg.mxu0
    %v877 = vadd.f32 %v829, %v872
    %v878 = vxor.u32 %v877, 2147483648
    %v879 = vmul.f32 %v878, 1.442695
    %v880 = vpow.pop %v879
    %v881 = vadd.f32 %v880, 1.0
    %v882 = vrcp.pop %v881
    %v883 = vmul.f32 1.0, %v882
    %v884 = vtanh.pop %v877
    %v885 = vmul.f32 %v883, %v744
    %887 = vrot.lane.b32.xlu0 %v884, 32
    %v888 = vpop.permute.xlu0 %887
    %v890 = vmul.f32 %v883, %v888
    %892 = vrot.lane.b32.xlu0 %v890, 32
    %v893 = vpop.permute.xlu0 %892
    %v895 = vadd.f32 %v885, %v893
    %v896 = vtanh.pop %v895
    %898 = vrot.lane.b32.xlu0 %v896, 32
    %v899 = vpop.permute.xlu0 %898
    %v901 = vmul.f32 %v883, %v899
    %903 = vrot.lane.b32.xlu0 %v901, 64
    %v904 = vpop.permute.xlu0 %903
    %907 = vrot.lane.b32.xlu0 %v827, 96
    %v908 = vpop.permute.xlu0 %907
    %v910 = vsel %vm57, %v904, %v908
    %v911 = vpack.c.bf16 %v910, %v910
    %v913 = vsel %vm156, %v911, 0
    %915 = vmatprep.subr.bf16.mxu0 0
    %916 = vmatpush1.bf16.msra.mxu0 %v148
    %917 = vmatprep.subr.bf16.mxu0 0
    %918 = vmatpush1.bf16.msra.mxu0 %v149
    %919 = vmatprep.subr.bf16.mxu0 0
    %920 = vmatpush1.bf16.msra.mxu0 %v150
    %921 = vmatprep.subr.bf16.mxu0 0
    %922 = vmatpush1.bf16.msra.mxu0 %v151
    %923 = vmatprep.subr.bf16.mxu0 0
    %924 = vmatpush1.bf16.msra.mxu0 0
    %925 = vmatprep.subr.bf16.mxu0 0
    %926 = vmatpush1.bf16.msra.mxu0 0
    %927 = vmatprep.subr.bf16.mxu0 0
    %928 = vmatpush1.bf16.msra.mxu0 0
    %929 = vmatprep.subr.bf16.mxu0 0
    %930 = vmatpush1.bf16.msra.mxu0 0
    %931 = vmatprep.subr.bf16.mxu0 0
    %932 = vmatpush1.bf16.msra.mxu0 0
    %933 = vmatprep.subr.bf16.mxu0 0
    %934 = vmatpush1.bf16.msra.mxu0 0
    %935 = vmatprep.subr.bf16.mxu0 0
    %936 = vmatpush1.bf16.msra.mxu0 0
    %937 = vmatprep.subr.bf16.mxu0 0
    %938 = vmatpush1.bf16.msra.mxu0 0
    %939 = vmatprep.subr.bf16.mxu0 0
    %940 = vmatpush1.bf16.msra.mxu0 0
    %941 = vmatprep.subr.bf16.mxu0 0
    %942 = vmatpush1.bf16.msra.mxu0 0
    %943 = vmatprep.subr.bf16.mxu0 0
    %944 = vmatpush1.bf16.msra.mxu0 0
    %945 = vmatprep.subr.bf16.mxu0 0
    %946 = vmatpush1.bf16.msra.mxu0 0
    %947 = vmatprep.mubr.bf16.mxu0 0
    %948 = vmatmul.mubr.bf16.gmra.mrb[0].mxu0 %v913
    %v949 = vpop.f32.mrb[0].mxu0
    %v950 = vadd.f32 %v42, %v949
    %v951 = vpop.f32.mrb[0].mxu0
    %v952 = vpop.f32.mrb[0].mxu0
    %v953 = vpop.f32.mrb[0].mxu0
    %954 = vdwg.mxu0
    %v955 = vxor.u32 %v950, 2147483648
    %v956 = vmul.f32 %v955, 1.442695
    %v957 = vpow.pop %v956
    %v958 = vadd.f32 %v957, 1.0
    %v959 = vrcp.pop %v958
    %v960 = vmul.f32 1.0, %v959
    %v961 = vtanh.pop %v950
    %v962 = vmul.f32 %v960, %v821
    %964 = vrot.lane.b32.xlu0 %v961, 32
    %v965 = vpop.permute.xlu0 %964
    %v967 = vmul.f32 %v960, %v965
    %969 = vrot.lane.b32.xlu0 %v967, 32
    %v970 = vpop.permute.xlu0 %969
    %v972 = vadd.f32 %v962, %v970
    %v973 = vtanh.pop %v972
    %975 = vrot.lane.b32.xlu0 %v973, 32
    %v976 = vpop.permute.xlu0 %975
    %v978 = vmul.f32 %v960, %v976
    %s979 = scalar_lea.vmem %s0, 12
    %v980 = vld [vmem:[%s979] sm:$0x3]
    %v981 = vpack.c.bf16 %v901, %v901
    %983 = vrot.lane.b32.xlu0 %v981, 64
    %v984 = vpop.permute.xlu0 %983
    %v986 = vsel %vm57, %v984, 0
    %988 = vmatprep.subr.bf16.mxu0 0
    %989 = vmatpush1.bf16.msra.mxu0 %v53
    %990 = vmatprep.subr.bf16.mxu0 0
    %991 = vmatpush1.bf16.msra.mxu0 %v54
    %992 = vmatprep.subr.bf16.mxu0 0
    %993 = vmatpush1.bf16.msra.mxu0 0
    %994 = vmatprep.subr.bf16.mxu0 0
    %995 = vmatpush1.bf16.msra.mxu0 0
    %996 = vmatprep.subr.bf16.mxu0 0
    %997 = vmatpush1.bf16.msra.mxu0 0
    %998 = vmatprep.subr.bf16.mxu0 0
    %999 = vmatpush1.bf16.msra.mxu0 0
    %1000 = vmatprep.subr.bf16.mxu0 0
    %1001 = vmatpush1.bf16.msra.mxu0 0
    %1002 = vmatprep.subr.bf16.mxu0 0
    %1003 = vmatpush1.bf16.msra.mxu0 0
    %1004 = vmatprep.subr.bf16.mxu0 0
    %1005 = vmatpush1.bf16.msra.mxu0 0
    %1006 = vmatprep.subr.bf16.mxu0 0
    %1007 = vmatpush1.bf16.msra.mxu0 0
    %1008 = vmatprep.subr.bf16.mxu0 0
    %1009 = vmatpush1.bf16.msra.mxu0 0
    %1010 = vmatprep.subr.bf16.mxu0 0
    %1011 = vmatpush1.bf16.msra.mxu0 0
    %1012 = vmatprep.subr.bf16.mxu0 0
    %1013 = vmatpush1.bf16.msra.mxu0 0
    %1014 = vmatprep.subr.bf16.mxu0 0
    %1015 = vmatpush1.bf16.msra.mxu0 0
    %1016 = vmatprep.subr.bf16.mxu0 0
    %1017 = vmatpush1.bf16.msra.mxu0 0
    %1018 = vmatprep.subr.bf16.mxu0 0
    %1019 = vmatpush1.bf16.msra.mxu0 0
    %1020 = vmatprep.mubr.bf16.mxu0 0
    %1021 = vmatmul.mubr.bf16.gmra.mrb[0].mxu0 %v986
    %v1022 = vpop.f32.mrb[0].mxu0
    %v1023 = vadd.f32 0.0, %v1022
    %v1024 = vpop.f32.mrb[0].mxu0
    %v1025 = vpop.f32.mrb[0].mxu0
    %v1026 = vpop.f32.mrb[0].mxu0
    %1027 = vdwg.mxu0
    %v1028 = vadd.f32 %v980, %v1023
    %v1029 = vxor.u32 %v1028, 2147483648
    %v1030 = vmul.f32 %v1029, 1.442695
    %v1031 = vpow.pop %v1030
    %v1032 = vadd.f32 %v1031, 1.0
    %v1033 = vrcp.pop %v1032
    %v1034 = vmul.f32 1.0, %v1033
    %v1035 = vtanh.pop %v1028
    %v1036 = vmul.f32 %v1034, %v895
    %1038 = vrot.lane.b32.xlu0 %v1035, 32
    %v1039 = vpop.permute.xlu0 %1038
    %v1041 = vmul.f32 %v1034, %v1039
    %1043 = vrot.lane.b32.xlu0 %v1041, 32
    %v1044 = vpop.permute.xlu0 %1043
    %v1046 = vadd.f32 %v1036, %v1044
    %v1047 = vtanh.pop %v1046
    %1049 = vrot.lane.b32.xlu0 %v1047, 32
    %v1050 = vpop.permute.xlu0 %1049
    %v1052 = vmul.f32 %v1034, %v1050
    %1054 = vrot.lane.b32.xlu0 %v1052, 64
    %v1055 = vpop.permute.xlu0 %1054
    %1058 = vrot.lane.b32.xlu0 %v978, 96
    %v1059 = vpop.permute.xlu0 %1058
    %v1061 = vsel %vm57, %v1055, %v1059
    %v1062 = vpack.c.bf16 %v1061, %v1061
    %v1064 = vsel %vm156, %v1062, 0
    %1066 = vmatprep.subr.bf16.mxu0 0
    %1067 = vmatpush1.bf16.msra.mxu0 %v148
    %1068 = vmatprep.subr.bf16.mxu0 0
    %1069 = vmatpush1.bf16.msra.mxu0 %v149
    %1070 = vmatprep.subr.bf16.mxu0 0
    %1071 = vmatpush1.bf16.msra.mxu0 %v150
    %1072 = vmatprep.subr.bf16.mxu0 0
    %1073 = vmatpush1.bf16.msra.mxu0 %v151
    %1074 = vmatprep.subr.bf16.mxu0 0
    %1075 = vmatpush1.bf16.msra.mxu0 0
    %1076 = vmatprep.subr.bf16.mxu0 0
    %1077 = vmatpush1.bf16.msra.mxu0 0
    %1078 = vmatprep.subr.bf16.mxu0 0
    %1079 = vmatpush1.bf16.msra.mxu0 0
    %1080 = vmatprep.subr.bf16.mxu0 0
    %1081 = vmatpush1.bf16.msra.mxu0 0
    %1082 = vmatprep.subr.bf16.mxu0 0
    %1083 = vmatpush1.bf16.msra.mxu0 0
    %1084 = vmatprep.subr.bf16.mxu0 0
    %1085 = vmatpush1.bf16.msra.mxu0 0
    %1086 = vmatprep.subr.bf16.mxu0 0
    %1087 = vmatpush1.bf16.msra.mxu0 0
    %1088 = vmatprep.subr.bf16.mxu0 0
    %1089 = vmatpush1.bf16.msra.mxu0 0
    %1090 = vmatprep.subr.bf16.mxu0 0
    %1091 = vmatpush1.bf16.msra.mxu0 0
    %1092 = vmatprep.subr.bf16.mxu0 0
    %1093 = vmatpush1.bf16.msra.mxu0 0
    %1094 = vmatprep.subr.bf16.mxu0 0
    %1095 = vmatpush1.bf16.msra.mxu0 0
    %1096 = vmatprep.subr.bf16.mxu0 0
    %1097 = vmatpush1.bf16.msra.mxu0 0
    %1098 = vmatprep.mubr.bf16.mxu0 0
    %1099 = vmatmul.mubr.bf16.gmra.mrb[0].mxu0 %v1064
    %v1100 = vpop.f32.mrb[0].mxu0
    %v1101 = vadd.f32 %v42, %v1100
    %v1102 = vpop.f32.mrb[0].mxu0
    %v1103 = vpop.f32.mrb[0].mxu0
    %v1104 = vpop.f32.mrb[0].mxu0
    %1105 = vdwg.mxu0
    %v1106 = vxor.u32 %v1101, 2147483648
    %v1107 = vmul.f32 %v1106, 1.442695
    %v1108 = vpow.pop %v1107
    %v1109 = vadd.f32 %v1108, 1.0
    %v1110 = vrcp.pop %v1109
    %v1111 = vmul.f32 1.0, %v1110
    %v1112 = vtanh.pop %v1101
    %v1113 = vmul.f32 %v1111, %v972
    %1115 = vrot.lane.b32.xlu0 %v1112, 32
    %v1116 = vpop.permute.xlu0 %1115
    %v1118 = vmul.f32 %v1111, %v1116
    %1120 = vrot.lane.b32.xlu0 %v1118, 32
    %v1121 = vpop.permute.xlu0 %1120
    %v1123 = vadd.f32 %v1113, %v1121
    %v1124 = vtanh.pop %v1123
    %1126 = vrot.lane.b32.xlu0 %v1124, 32
    %v1127 = vpop.permute.xlu0 %1126
    %v1129 = vmul.f32 %v1111, %v1127
    %s1130 = scalar_lea.vmem %s0, 14
    %v1131 = vld [vmem:[%s1130] sm:$0x3]
    %v1132 = vpack.c.bf16 %v1052, %v1052
    %1134 = vrot.lane.b32.xlu0 %v1132, 64
    %v1135 = vpop.permute.xlu0 %1134
    %v1137 = vsel %vm57, %v1135, 0
    %1139 = vmatprep.subr.bf16.mxu0 0
    %1140 = vmatpush1.bf16.msra.mxu0 %v53
    %1141 = vmatprep.subr.bf16.mxu0 0
    %1142 = vmatpush1.bf16.msra.mxu0 %v54
    %1143 = vmatprep.subr.bf16.mxu0 0
    %1144 = vmatpush1.bf16.msra.mxu0 0
    %1145 = vmatprep.subr.bf16.mxu0 0
    %1146 = vmatpush1.bf16.msra.mxu0 0
    %1147 = vmatprep.subr.bf16.mxu0 0
    %1148 = vmatpush1.bf16.msra.mxu0 0
    %1149 = vmatprep.subr.bf16.mxu0 0
    %1150 = vmatpush1.bf16.msra.mxu0 0
    %1151 = vmatprep.subr.bf16.mxu0 0
    %1152 = vmatpush1.bf16.msra.mxu0 0
    %1153 = vmatprep.subr.bf16.mxu0 0
    %1154 = vmatpush1.bf16.msra.mxu0 0
    %1155 = vmatprep.subr.bf16.mxu0 0
    %1156 = vmatpush1.bf16.msra.mxu0 0
    %1157 = vmatprep.subr.bf16.mxu0 0
    %1158 = vmatpush1.bf16.msra.mxu0 0
    %1159 = vmatprep.subr.bf16.mxu0 0
    %1160 = vmatpush1.bf16.msra.mxu0 0
    %1161 = vmatprep.subr.bf16.mxu0 0
    %1162 = vmatpush1.bf16.msra.mxu0 0
    %1163 = vmatprep.subr.bf16.mxu0 0
    %1164 = vmatpush1.bf16.msra.mxu0 0
    %1165 = vmatprep.subr.bf16.mxu0 0
    %1166 = vmatpush1.bf16.msra.mxu0 0
    %1167 = vmatprep.subr.bf16.mxu0 0
    %1168 = vmatpush1.bf16.msra.mxu0 0
    %1169 = vmatprep.subr.bf16.mxu0 0
    %1170 = vmatpush1.bf16.msra.mxu0 0
    %1171 = vmatprep.mubr.bf16.mxu0 0
    %1172 = vmatmul.mubr.bf16.gmra.mrb[0].mxu0 %v1137
    %v1173 = vpop.f32.mrb[0].mxu0
    %v1174 = vadd.f32 0.0, %v1173
    %v1175 = vpop.f32.mrb[0].mxu0
    %v1176 = vpop.f32.mrb[0].mxu0
    %v1177 = vpop.f32.mrb[0].mxu0
    %1178 = vdwg.mxu0
    %v1179 = vadd.f32 %v1131, %v1174
    %v1180 = vxor.u32 %v1179, 2147483648
    %v1181 = vmul.f32 %v1180, 1.442695
    %v1182 = vpow.pop %v1181
    %v1183 = vadd.f32 %v1182, 1.0
    %v1184 = vrcp.pop %v1183
    %v1185 = vmul.f32 1.0, %v1184
    %v1186 = vtanh.pop %v1179
    %v1187 = vmul.f32 %v1185, %v1046
    %1189 = vrot.lane.b32.xlu0 %v1186, 32
    %v1190 = vpop.permute.xlu0 %1189
    %v1192 = vmul.f32 %v1185, %v1190
    %1194 = vrot.lane.b32.xlu0 %v1192, 32
    %v1195 = vpop.permute.xlu0 %1194
    %v1197 = vadd.f32 %v1187, %v1195
    %v1198 = vtanh.pop %v1197
    %1200 = vrot.lane.b32.xlu0 %v1198, 32
    %v1201 = vpop.permute.xlu0 %1200
    %v1203 = vmul.f32 %v1185, %v1201
    %1205 = vrot.lane.b32.xlu0 %v1203, 64
    %v1206 = vpop.permute.xlu0 %1205
    %1209 = vrot.lane.b32.xlu0 %v1129, 96
    %v1210 = vpop.permute.xlu0 %1209
    %v1212 = vsel %vm57, %v1206, %v1210
    %v1213 = vpack.c.bf16 %v1212, %v1212
    %v1215 = vsel %vm156, %v1213, 0
    %1217 = vmatprep.subr.bf16.mxu0 0
    %1218 = vmatpush1.bf16.msra.mxu0 %v148
    %1219 = vmatprep.subr.bf16.mxu0 0
    %1220 = vmatpush1.bf16.msra.mxu0 %v149
    %1221 = vmatprep.subr.bf16.mxu0 0
    %1222 = vmatpush1.bf16.msra.mxu0 %v150
    %1223 = vmatprep.subr.bf16.mxu0 0
    %1224 = vmatpush1.bf16.msra.mxu0 %v151
    %1225 = vmatprep.subr.bf16.mxu0 0
    %1226 = vmatpush1.bf16.msra.mxu0 0
    %1227 = vmatprep.subr.bf16.mxu0 0
    %1228 = vmatpush1.bf16.msra.mxu0 0
    %1229 = vmatprep.subr.bf16.mxu0 0
    %1230 = vmatpush1.bf16.msra.mxu0 0
    %1231 = vmatprep.subr.bf16.mxu0 0
    %1232 = vmatpush1.bf16.msra.mxu0 0
    %1233 = vmatprep.subr.bf16.mxu0 0
    %1234 = vmatpush1.bf16.msra.mxu0 0
    %1235 = vmatprep.subr.bf16.mxu0 0
    %1236 = vmatpush1.bf16.msra.mxu0 0
    %1237 = vmatprep.subr.bf16.mxu0 0
    %1238 = vmatpush1.bf16.msra.mxu0 0
    %1239 = vmatprep.subr.bf16.mxu0 0
    %1240 = vmatpush1.bf16.msra.mxu0 0
    %1241 = vmatprep.subr.bf16.mxu0 0
    %1242 = vmatpush1.bf16.msra.mxu0 0
    %1243 = vmatprep.subr.bf16.mxu0 0
    %1244 = vmatpush1.bf16.msra.mxu0 0
    %1245 = vmatprep.subr.bf16.mxu0 0
    %1246 = vmatpush1.bf16.msra.mxu0 0
    %1247 = vmatprep.subr.bf16.mxu0 0
    %1248 = vmatpush1.bf16.msra.mxu0 0
    %1249 = vmatprep.mubr.bf16.mxu0 0
    %1250 = vmatmul.mubr.bf16.gmra.mrb[0].mxu0 %v1215
    %v1251 = vpop.f32.mrb[0].mxu0
    %v1252 = vadd.f32 %v42, %v1251
    %v1253 = vpop.f32.mrb[0].mxu0
    %v1254 = vpop.f32.mrb[0].mxu0
    %v1255 = vpop.f32.mrb[0].mxu0
    %1256 = vdwg.mxu0
    %v1257 = vxor.u32 %v1252, 2147483648
    %v1258 = vmul.f32 %v1257, 1.442695
    %v1259 = vpow.pop %v1258
    %v1260 = vadd.f32 %v1259, 1.0
    %v1261 = vrcp.pop %v1260
    %v1262 = vmul.f32 1.0, %v1261
    %v1263 = vtanh.pop %v1252
    %v1264 = vmul.f32 %v1262, %v1123
    %1266 = vrot.lane.b32.xlu0 %v1263, 32
    %v1267 = vpop.permute.xlu0 %1266
    %v1269 = vmul.f32 %v1262, %v1267
    %1271 = vrot.lane.b32.xlu0 %v1269, 32
    %v1272 = vpop.permute.xlu0 %1271
    %v1274 = vadd.f32 %v1264, %v1272
    %v1275 = vtanh.pop %v1274
    %1277 = vrot.lane.b32.xlu0 %v1275, 32
    %v1278 = vpop.permute.xlu0 %1277
    %v1280 = vmul.f32 %v1262, %v1278
    %1282 = vrot.lane.b32.xlu0 %v1280, 64
    %v1283 = vpop.permute.xlu0 %1282
    %vm1285 = vcmask 254976
    %v1286 = vsel %vm1285, %v1283, 0.0
    %1287 = vadd.xlane.f32.xlu0 %v1286
    %v1288 = vpop.xlane.xlu0 %1287
    %v1289 = vrcp.pop 32.0
    %v1290 = vmul.f32 %v1288, %v1289
    %v1291 = vsub.f32 %v1280, %v1290
    %v1292 = vmul.f32 %v1291, %v1291
    %1294 = vrot.lane.b32.xlu0 %v1292, 64
    %v1295 = vpop.permute.xlu0 %1294
    %v1297 = vsel %vm1285, %v1295, 0.0
    %1298 = vadd.xlane.f32.xlu0 %v1297
    %v1299 = vpop.xlane.xlu0 %1298
    %v1300 = vmul.f32 %v1299, %v1289
    %v1301 = vadd.f32 %v1300, 1e-05
    %v1302 = vrsqrt.pop %v1301
    %v1303 = vmul.f32 %v1291, %v1302
    %v1304 = vld [vmem:[%s4] sm:$0x1]
    %v1306 = vlaneseq
    %v1307 = vshrl.u32 %v1306, 7
    %v1308 = vsub.s32 0, %v1307
    %v1309 = vrot.slane %v1304, %v1308
    %1310 = vrot.lane.b32.xlu0 %v1309, 64
    %v1311 = vpop.permute.xlu0 %1310
    %v1313 = vmul.f32 %v1303, %v1311
    %v1314 = vld [vmem:[%s5] sm:$0x1]
    %v1316 = vlaneseq
    %v1317 = vshrl.u32 %v1316, 7
    %v1318 = vsub.s32 0, %v1317
    %v1319 = vrot.slane %v1314, %v1318
    %1320 = vrot.lane.b32.xlu0 %v1319, 64
    %v1321 = vpop.permute.xlu0 %1320
    %v1323 = vadd.f32 %v1313, %v1321
    %1325 = vrot.lane.b32.xlu0 %v1323, 64
    %v1326 = vpop.permute.xlu0 %1325
    %1328 = vst.msk [vmem:[#allocation2] sm:$0x3] %vm1285, %v1326
    // Predicated region
    $region26: #{lstm_encoder_forward.1} parent=1 // pred_check
      _
    $region27: #{lstm_encoder_forward.1} parent=1 // pred_check_branch
      %1330 = sbr.rel (0) target = $region29
    $region28: #{lstm_encoder_forward.1} parent=1 // pred_region
      %s1332 = ssub.s32 32, 32
      %1333 = vsyncadd [#allocation3], %s1332
      %s1335 = sshll.u32 [#allocation2], 4
      %s1336 = int_to_ptr.vmem [resolvable:$true] %s1335
      %1338 = dma.vmem_to_hbm [thread:$0]  %s1336, 32, %s6, [#allocation3]
    $region29: #{lstm_encoder_forward.1} parent=1 // pred_fallthru
      _
    // Predicated region
    $region30: #{lstm_encoder_forward.1} parent=1 // pred_check
      _
    $region31: #{lstm_encoder_forward.1} parent=1 // pred_check_branch
      %1340 = sbr.rel (0) target = $region33
    $region32: #{lstm_encoder_forward.1} parent=1 // pred_region
      %1341 = dma.done [#allocation3], 32
    $region33: #{lstm_encoder_forward.1} parent=1 // pred_fallthru
      _
    %1342 = vsyncpa [#allocation3], 1

</llo_original>
